<compile_context>
chip_gen: v7x
topology: tpu7x:2x2x1
jax: 0.10.0
libtpu: 0.0.40
codegen_flags: <defaults>
</compile_context>

<pallas_src>
import functools

import jax
import jax.numpy as jnp
from jax.experimental import pallas as pl
from jax.experimental.pallas import tpu as pltpu


def _sta_kernel(xs_q_ref, xt_q_ref, xs_kv_ref, xt_kv_ref,
                wq_ref, bq_ref, wvs_ref, bvs_ref, wt_ref, bt_ref,
                out_ref,
                q_sc, m_sc, l_sc, acc_sc,
                *, scale, n_pos):
    ki = pl.program_id(2)
    nk = pl.num_programs(2)
    C = acc_sc.shape[0]
    tk = xs_kv_ref.shape[2]

    @pl.when(ki == 0)
    def _init():
        # Project (and pre-scale) the query tile once per q tile; reset the
        # online-softmax state.
        q = jnp.dot(wq_ref[...], xs_q_ref[0],
                    preferred_element_type=jnp.float32) + bq_ref[...]
        q_sc[...] = q * scale                                        # (Cq, tq)
        m_sc[...] = jnp.full(m_sc.shape, -jnp.inf, jnp.float32)
        l_sc[...] = jnp.zeros(l_sc.shape, jnp.float32)
        acc_sc[...] = jnp.zeros(acc_sc.shape, jnp.float32)

    xs_kv = xs_kv_ref[0]                                             # (C, tk)
    xt_kv = xt_kv_ref[0]                                             # (C, tk)

    # Packed temporal projection: rows [0:C] -> temporal value, rows [C:] -> key.
    proj_t = jnp.dot(wt_ref[...], xt_kv,
                     preferred_element_type=jnp.float32) + bt_ref[...]  # (C+Cq, tk)
    vt = proj_t[:C, :]                                               # (C, tk)
    k = proj_t[C:, :]                                                # (Cq, tk)

    vs = jnp.dot(wvs_ref[...], xs_kv,
                 preferred_element_type=jnp.float32) + bvs_ref[...]  # (C, tk)
    v = vs + vt          # attn @ vs + attn @ vt == attn @ (vs + vt)

    # energy[kv, q] = k_kv . q_q  (contract Cq directly, no transpose of k)
    s = jax.lax.dot_general(k, q_sc[...], (((0,), (0,)), ((), ())),
                            preferred_element_type=jnp.float32)      # (tk, tq)

    if n_pos % tk != 0:
        # Mask the padded tail of the last kv tile (static trace-time branch).
        kv_pos_s = ki * tk + jax.lax.broadcasted_iota(jnp.int32, (tk, 1), 0)
        s = jnp.where(kv_pos_s < n_pos, s, -1e30)
        kv_pos_l = ki * tk + jax.lax.broadcasted_iota(jnp.int32, (1, tk), 1)
        v = jnp.where(kv_pos_l < n_pos, v, 0.0)

    # Online softmax over the kv (sublane) axis.
    m_prev = m_sc[...]
    m_new = jnp.maximum(m_prev, jnp.max(s, axis=0, keepdims=True))   # (1, tq)
    alpha = jnp.exp(m_prev - m_new)
    p = jnp.exp(s - m_new)                                           # (tk, tq)
    l_sc[...] = alpha * l_sc[...] + jnp.sum(p, axis=0, keepdims=True)
    acc_sc[...] = alpha * acc_sc[...] + jnp.dot(
        v, p, preferred_element_type=jnp.float32)                    # (C, tq)
    m_sc[...] = m_new

    @pl.when(ki == nk - 1)
    def _finalize():
        # Approx EUP reciprocal + one Newton step (cheap; restores f32 accuracy).
        l = l_sc[...]
        inv_l = pl.reciprocal(l, approx=True)
        inv_l = inv_l * (2.0 - l * inv_l)
        out = acc_sc[...] * inv_l + xs_q_ref[0] + xt_q_ref[0]        # residuals
        out_ref[0] = out.astype(out_ref.dtype)


def sta_module_pallas(x_spatial, x_temporal, params, *, block_q=None, block_k=None):
    """Forward pass of STA_Module. Inputs are NCHW float32 like PyTorch."""
    B, C, H, W = x_spatial.shape
    N = H * W
    Cq = C // 8
    scale = float(Cq) ** (-0.5)          # torch: (chanel_in // 8) ** (-0.5)

    # Params in torch layout: weight (Cout, Cin) from the 1x1 conv, bias (Cout,).
    wq, bq, wk, bk, wvs, bvs, wvt, bvt = params

    # Pack [W_value_temporal ; W_key] so the temporal tile needs ONE wide matmul.
    wt_pack = jnp.concatenate([wvt, wk], axis=0)              # (C + Cq, C)
    bt_pack = jnp.concatenate([bvt, bk], axis=0)[:, None]     # (C + Cq, 1)
    bq_col = bq[:, None]                                      # (Cq, 1)
    bvs_col = bvs[:, None]                                    # (C, 1)

    # Channels-first flatten only; no HBM transpose on the way in or out.
    xs = x_spatial.reshape(B, C, N)
    xt = x_temporal.reshape(B, C, N)

    def pick(n, cap):
        return n if n <= cap else cap
    tq = block_q if block_q is not None else pick(N, 256)
    tk = block_k if block_k is not None else pick(N, 512)
    assert tq == N or tq % 128 == 0, "query tile must be N or a multiple of 128"
    assert tk == N or tk % 128 == 0, "kv tile must be N or a multiple of 128"
    nq = pl.cdiv(N, tq)
    nk = pl.cdiv(N, tk)

    # Advisory cost estimate for the XLA scheduler.
    flops = int(B * (2 * N * C * (2 * C + 2 * Cq) + 2 * N * N * (C + Cq)))
    transcendentals = int(B * N * N)
    bytes_accessed = int(4 * (2 * B * C * N * (1 + nq) + B * C * N
                              + 2 * C * C + 2 * Cq * C + 2 * C + 2 * Cq))

    const = lambda shape: pl.BlockSpec(shape, lambda b, qi, ki: (0,) * len(shape))

    out = pl.pallas_call(
        functools.partial(_sta_kernel, scale=scale, n_pos=N),
        out_shape=jax.ShapeDtypeStruct((B, C, N), x_spatial.dtype),
        grid_spec=pltpu.PrefetchScalarGridSpec(
            num_scalar_prefetch=0,
            grid=(B, nq, nk),
            in_specs=[
                pl.BlockSpec((1, C, tq), lambda b, qi, ki: (b, 0, qi)),  # xs (query rows)
                pl.BlockSpec((1, C, tq), lambda b, qi, ki: (b, 0, qi)),  # xt (residual)
                pl.BlockSpec((1, C, tk), lambda b, qi, ki: (b, 0, ki)),  # xs (value rows)
                pl.BlockSpec((1, C, tk), lambda b, qi, ki: (b, 0, ki)),  # xt (key/value rows)
                const((Cq, C)), const((Cq, 1)),                          # query conv
                const((C, C)), const((C, 1)),                            # spatial value conv
                const((C + Cq, C)), const((C + Cq, 1)),                  # packed temporal conv
            ],
            out_specs=pl.BlockSpec((1, C, tq), lambda b, qi, ki: (b, 0, qi)),
            scratch_shapes=[
                pltpu.VMEM((Cq, tq), jnp.float32),   # scaled query tile
                pltpu.VMEM((1, tq), jnp.float32),    # running max
                pltpu.VMEM((1, tq), jnp.float32),    # running sum
                pltpu.VMEM((C, tq), jnp.float32),    # output accumulator
            ],
        ),
        compiler_params=pltpu.CompilerParams(
            dimension_semantics=("parallel", "parallel", "arbitrary"),
            vmem_limit_bytes=48 * 1024 * 1024,
        ),
        cost_estimate=pl.CostEstimate(
            flops=flops, transcendentals=transcendentals,
            bytes_accessed=bytes_accessed),
    )(xs, xt, xs, xt, wq, bq_col, wvs, bvs_col, wt_pack, bt_pack)

    return out.reshape(B, C, H, W)


def sta_module_ref(x_spatial, x_temporal, params):
    """Pure-JAX reference mirroring the PyTorch forward exactly."""
    B, C, H, W = x_spatial.shape
    N = H * W
    Cq = C // 8
    wq, bq, wk, bk, wvs, bvs, wvt, bvt = params
    xs = x_spatial.reshape(B, C, N)
    xt = x_temporal.reshape(B, C, N)

    def conv1x1(x, w, b):                       # w (Cout, Cin), b (Cout,)
        return jnp.einsum('oc,bcn->bon', w, x) + b[None, :, None]

    proj_query = jnp.transpose(conv1x1(xs, wq, bq), (0, 2, 1))   # (B, N, Cq)
    proj_key = conv1x1(xt, wk, bk)                                # (B, Cq, N)
    energy = (Cq ** -0.5) * jnp.einsum('bnc,bcm->bnm', proj_query, proj_key)
    attention = jax.nn.softmax(energy, axis=-1)                   # (B, N, N)
    proj_value = conv1x1(xs, wvs, bvs)                            # (B, C, N)
    proj_value2 = conv1x1(xt, wvt, bvt)
    out = jnp.einsum('bcm,bnm->bcn', proj_value, attention)
    out2 = jnp.einsum('bcm,bnm->bcn', proj_value2, attention)
    return (out + out2).reshape(B, C, H, W) + x_spatial + x_temporal


def init_params(key, C):
    """Synthetic params in torch layout: 1x1 conv weight (Cout, Cin), bias (Cout,)."""
    Cq = C // 8
    ks = jax.random.split(key, 8)
    bound = 1.0 / (C ** 0.5)
    u = lambda k, shape: jax.random.uniform(k, shape, jnp.float32, -bound, bound)
    wq, bq = u(ks[0], (Cq, C)), u(ks[1], (Cq,))
    wk, bk = u(ks[2], (Cq, C)), u(ks[3], (Cq,))
    wvs, bvs = u(ks[4], (C, C)), u(ks[5], (C,))
    wvt, bvt = u(ks[6], (C, C)), u(ks[7], (C,))
    return (wq, bq, wk, bk, wvs, bvs, wvt, bvt)


if __name__ == "__main__":
    key = jax.random.PRNGKey(0)

    # Small shape consistent with the module: in_dim=16 -> Cq=2, N=64 (single tile).
    B, C, H, W = 2, 16, 8, 8
    k1, k2, k3, key = jax.random.split(key, 4)
    x_spatial = jax.random.normal(k1, (B, C, H, W), jnp.float32)
    x_temporal = jax.random.normal(k2, (B, C, H, W), jnp.float32)
    params = init_params(k3, C)

    out = jax.block_until_ready(sta_module_pallas(x_spatial, x_temporal, params))
    ref = sta_module_ref(x_spatial, x_temporal, params)
    assert out.shape == ref.shape, (out.shape, ref.shape)
    err = float(jnp.max(jnp.abs(out - ref)))
    assert err < 1e-3, f"max abs err {err}"

    # Second shape exercising the flash-tiled path (nq=nk=2, padded last tiles).
    B2, C2, H2, W2 = 1, 32, 10, 20          # N = 200, not a multiple of 128
    k1, k2, k3, key = jax.random.split(key, 4)
    xs2 = jax.random.normal(k1, (B2, C2, H2, W2), jnp.float32)
    xt2 = jax.random.normal(k2, (B2, C2, H2, W2), jnp.float32)
    params2 = init_params(k3, C2)
    out2 = jax.block_until_ready(
        sta_module_pallas(xs2, xt2, params2, block_q=128, block_k=128))
    ref2 = sta_module_ref(xs2, xt2, params2)
    err2 = float(jnp.max(jnp.abs(out2 - ref2)))
    assert err2 < 1e-3, f"max abs err (tiled) {err2}"

    print("KERNEL_OK")
</pallas_src>

<mosaic_0001>
module attributes {stable_mosaic.version = 11 : i64} {
  func.func @_sta_kernel(%arg0: i32, %arg1: i32, %arg2: i32, %arg3: memref<1x16x64xf32, #tpu.memory_space<vmem>>, %arg4: memref<1x16x64xf32, #tpu.memory_space<vmem>>, %arg5: memref<1x16x64xf32, #tpu.memory_space<vmem>>, %arg6: memref<1x16x64xf32, #tpu.memory_space<vmem>>, %arg7: memref<2x16xf32, #tpu.memory_space<vmem>>, %arg8: memref<2x1xf32, #tpu.memory_space<vmem>>, %arg9: memref<16x16xf32, #tpu.memory_space<vmem>>, %arg10: memref<16x1xf32, #tpu.memory_space<vmem>>, %arg11: memref<18x16xf32, #tpu.memory_space<vmem>>, %arg12: memref<18x1xf32, #tpu.memory_space<vmem>>, %arg13: memref<1x16x64xf32, #tpu.memory_space<vmem>>, %arg14: memref<2x64xf32, #tpu.memory_space<vmem>>, %arg15: memref<1x64xf32, #tpu.memory_space<vmem>>, %arg16: memref<1x64xf32, #tpu.memory_space<vmem>>, %arg17: memref<16x64xf32, #tpu.memory_space<vmem>>) attributes {dimension_semantics = [#tpu.dimension_semantics<parallel>, #tpu.dimension_semantics<parallel>, #tpu.dimension_semantics<arbitrary>], iteration_bounds = array<i64: 2, 1, 1>, scalar_prefetch = 0 : i64, scratch_operands = 4 : i64, tpu.core_type = #tpu.core_type<tc>, window_params = [{transform_indices = @transform_0, window_bounds = array<i64: 1, 16, 64>}, {transform_indices = @transform_1, window_bounds = array<i64: 1, 16, 64>}, {transform_indices = @transform_2, window_bounds = array<i64: 1, 16, 64>}, {transform_indices = @transform_3, window_bounds = array<i64: 1, 16, 64>}, {pipeline_mode = #tpu.pipeline_mode<synchronous>, transform_indices = @transform_4, window_bounds = array<i64: 2, 16>}, {pipeline_mode = #tpu.pipeline_mode<synchronous>, transform_indices = @transform_5, window_bounds = array<i64: 2, 1>}, {pipeline_mode = #tpu.pipeline_mode<synchronous>, transform_indices = @transform_6, window_bounds = array<i64: 16, 16>}, {pipeline_mode = #tpu.pipeline_mode<synchronous>, transform_indices = @transform_7, window_bounds = array<i64: 16, 1>}, {pipeline_mode = #tpu.pipeline_mode<synchronous>, transform_indices = @transform_8, window_bounds = array<i64: 18, 16>}, {pipeline_mode = #tpu.pipeline_mode<synchronous>, transform_indices = @transform_9, window_bounds = array<i64: 18, 1>}, {transform_indices = @transform_10, window_bounds = array<i64: 1, 16, 64>}]} {
    %c0_i32 = arith.constant 0 : i32
    %0 = arith.cmpi eq, %arg2, %c0_i32 : i32
    %1 = arith.extui %0 : i1 to i32
    %c0_i32_0 = arith.constant 0 : i32
    %2 = arith.cmpi ne, %1, %c0_i32_0 : i32
    scf.if %2 {
      %c0_35 = arith.constant 0 : index
      %c0_36 = arith.constant 0 : index
      %47 = vector.load %arg7[%c0_35, %c0_36] : memref<2x16xf32, #tpu.memory_space<vmem>>, vector<2x16xf32>
      %c0_37 = arith.constant 0 : index
      %c0_38 = arith.constant 0 : index
      %c0_39 = arith.constant 0 : index
      %48 = vector.load %arg3[%c0_37, %c0_38, %c0_39] : memref<1x16x64xf32, #tpu.memory_space<vmem>>, vector<1x16x64xf32>
      %49 = vector.shape_cast %48 : vector<1x16x64xf32> to vector<16x64xf32>
      %cst_40 = arith.constant dense<0.000000e+00> : vector<2x64xf32>
      %50 = tpu.matmul %47, %49, %cst_40 {dimension_numbers = #tpu.dot_dimension_numbers<[1], [0], [0], [1], [0, 0, 1, 1], [], []>} : vector<2x16xf32>, vector<16x64xf32>, vector<2x64xf32> -> vector<2x64xf32>
      %c0_41 = arith.constant 0 : index
      %c0_42 = arith.constant 0 : index
      %51 = vector.load %arg8[%c0_41, %c0_42] : memref<2x1xf32, #tpu.memory_space<vmem>>, vector<2x1xf32>
      %52 = vector.broadcast %51 : vector<2x1xf32> to vector<2x64xf32>
      %53 = arith.addf %50, %52 : vector<2x64xf32>
      %cst_43 = arith.constant 0.707106769 : f32
      %54 = vector.broadcast %cst_43 : f32 to vector<2x64xf32>
      %55 = arith.mulf %53, %54 : vector<2x64xf32>
      %c0_44 = arith.constant 0 : index
      %c0_45 = arith.constant 0 : index
      %56 = vector.load %arg14[%c0_44, %c0_45] : memref<2x64xf32, #tpu.memory_space<vmem>>, vector<2x64xf32>
      tpu.vector_store %arg14[%c0_44, %c0_45], %55 {strides = array<i32>} : memref<2x64xf32, #tpu.memory_space<vmem>>, vector<2x64xf32>,
      %cst_46 = arith.constant 0xFF800000 : f32
      %57 = vector.broadcast %cst_46 : f32 to vector<1x64xf32>
      %c0_47 = arith.constant 0 : index
      %c0_48 = arith.constant 0 : index
      %58 = vector.load %arg15[%c0_47, %c0_48] : memref<1x64xf32, #tpu.memory_space<vmem>>, vector<1x64xf32>
      tpu.vector_store %arg15[%c0_47, %c0_48], %57 {strides = array<i32>} : memref<1x64xf32, #tpu.memory_space<vmem>>, vector<1x64xf32>,
      %cst_49 = arith.constant 0.000000e+00 : f32
      %59 = vector.broadcast %cst_49 : f32 to vector<1x64xf32>
      %c0_50 = arith.constant 0 : index
      %c0_51 = arith.constant 0 : index
      %60 = vector.load %arg16[%c0_50, %c0_51] : memref<1x64xf32, #tpu.memory_space<vmem>>, vector<1x64xf32>
      tpu.vector_store %arg16[%c0_50, %c0_51], %59 {strides = array<i32>} : memref<1x64xf32, #tpu.memory_space<vmem>>, vector<1x64xf32>,
      %cst_52 = arith.constant 0.000000e+00 : f32
      %61 = vector.broadcast %cst_52 : f32 to vector<16x64xf32>
      %c0_53 = arith.constant 0 : index
      %c0_54 = arith.constant 0 : index
      %62 = vector.load %arg17[%c0_53, %c0_54] : memref<16x64xf32, #tpu.memory_space<vmem>>, vector<16x64xf32>
      tpu.vector_store %arg17[%c0_53, %c0_54], %61 {strides = array<i32>} : memref<16x64xf32, #tpu.memory_space<vmem>>, vector<16x64xf32>,
    } else {
    }
    %c0 = arith.constant 0 : index
    %c0_1 = arith.constant 0 : index
    %c0_2 = arith.constant 0 : index
    %3 = vector.load %arg5[%c0, %c0_1, %c0_2] : memref<1x16x64xf32, #tpu.memory_space<vmem>>, vector<1x16x64xf32>
    %4 = vector.shape_cast %3 : vector<1x16x64xf32> to vector<16x64xf32>
    %c0_3 = arith.constant 0 : index
    %c0_4 = arith.constant 0 : index
    %c0_5 = arith.constant 0 : index
    %5 = vector.load %arg6[%c0_3, %c0_4, %c0_5] : memref<1x16x64xf32, #tpu.memory_space<vmem>>, vector<1x16x64xf32>
    %6 = vector.shape_cast %5 : vector<1x16x64xf32> to vector<16x64xf32>
    %c0_6 = arith.constant 0 : index
    %c0_7 = arith.constant 0 : index
    %7 = vector.load %arg11[%c0_6, %c0_7] : memref<18x16xf32, #tpu.memory_space<vmem>>, vector<18x16xf32>
    %cst = arith.constant dense<0.000000e+00> : vector<18x64xf32>
    %8 = tpu.matmul %7, %6, %cst {dimension_numbers = #tpu.dot_dimension_numbers<[1], [0], [0], [1], [0, 0, 1, 1], [], []>} : vector<18x16xf32>, vector<16x64xf32>, vector<18x64xf32> -> vector<18x64xf32>
    %c0_8 = arith.constant 0 : index
    %c0_9 = arith.constant 0 : index
    %9 = vector.load %arg12[%c0_8, %c0_9] : memref<18x1xf32, #tpu.memory_space<vmem>>, vector<18x1xf32>
    %10 = vector.broadcast %9 : vector<18x1xf32> to vector<18x64xf32>
    %11 = arith.addf %8, %10 : vector<18x64xf32>
    %12 = vector.extract_strided_slice %11 {offsets = [0, 0], sizes = [16, 64], strides = [1, 1]} : vector<18x64xf32> to vector<16x64xf32>
    %13 = vector.extract_strided_slice %11 {offsets = [16, 0], sizes = [2, 64], strides = [1, 1]} : vector<18x64xf32> to vector<2x64xf32>
    %c0_10 = arith.constant 0 : index
    %c0_11 = arith.constant 0 : index
    %14 = vector.load %arg9[%c0_10, %c0_11] : memref<16x16xf32, #tpu.memory_space<vmem>>, vector<16x16xf32>
    %cst_12 = arith.constant dense<0.000000e+00> : vector<16x64xf32>
    %15 = tpu.matmul %14, %4, %cst_12 {dimension_numbers = #tpu.dot_dimension_numbers<[1], [0], [0], [1], [0, 0, 1, 1], [], []>} : vector<16x16xf32>, vector<16x64xf32>, vector<16x64xf32> -> vector<16x64xf32>
    %c0_13 = arith.constant 0 : index
    %c0_14 = arith.constant 0 : index
    %16 = vector.load %arg10[%c0_13, %c0_14] : memref<16x1xf32, #tpu.memory_space<vmem>>, vector<16x1xf32>
    %17 = vector.broadcast %16 : vector<16x1xf32> to vector<16x64xf32>
    %18 = arith.addf %15, %17 : vector<16x64xf32>
    %19 = arith.addf %18, %12 : vector<16x64xf32>
    %c0_15 = arith.constant 0 : index
    %c0_16 = arith.constant 0 : index
    %20 = vector.load %arg14[%c0_15, %c0_16] : memref<2x64xf32, #tpu.memory_space<vmem>>, vector<2x64xf32>
    %cst_17 = arith.constant dense<0.000000e+00> : vector<64x64xf32>
    %21 = tpu.matmul %13, %20, %cst_17 {dimension_numbers = #tpu.dot_dimension_numbers<[0], [0], [1], [1], [0, 1, 1, 1], [], []>} : vector<2x64xf32>, vector<2x64xf32>, vector<64x64xf32> -> vector<64x64xf32>
    %c0_18 = arith.constant 0 : index
    %c0_19 = arith.constant 0 : index
    %22 = vector.load %arg15[%c0_18, %c0_19] : memref<1x64xf32, #tpu.memory_space<vmem>>, vector<1x64xf32>
    %cst_20 = arith.constant dense<0xFF800000> : vector<64xf32>
    %23 = vector.multi_reduction <maximumf>, %21, %cst_20 [0] : vector<64x64xf32> to vector<64xf32>
    %24 = vector.shape_cast %23 : vector<64xf32> to vector<1x64xf32>
    %25 = arith.maximumf %22, %24 : vector<1x64xf32>
    %26 = arith.subf %22, %25 : vector<1x64xf32>
    %27 = math.exp %26 : vector<1x64xf32>
    %28 = vector.broadcast %25 : vector<1x64xf32> to vector<64x64xf32>
    %29 = arith.subf %21, %28 : vector<64x64xf32>
    %30 = math.exp %29 : vector<64x64xf32>
    %c0_21 = arith.constant 0 : index
    %c0_22 = arith.constant 0 : index
    %31 = vector.load %arg16[%c0_21, %c0_22] : memref<1x64xf32, #tpu.memory_space<vmem>>, vector<1x64xf32>
    %32 = arith.mulf %27, %31 : vector<1x64xf32>
    %cst_23 = arith.constant dense<0.000000e+00> : vector<64xf32>
    %33 = vector.multi_reduction <add>, %30, %cst_23 [0] : vector<64x64xf32> to vector<64xf32>
    %34 = vector.shape_cast %33 : vector<64xf32> to vector<1x64xf32>
    %35 = arith.addf %32, %34 : vector<1x64xf32>
    %c0_24 = arith.constant 0 : index
    %c0_25 = arith.constant 0 : index
    %36 = vector.load %arg16[%c0_24, %c0_25] : memref<1x64xf32, #tpu.memory_space<vmem>>, vector<1x64xf32>
    tpu.vector_store %arg16[%c0_24, %c0_25], %35 {strides = array<i32>} : memref<1x64xf32, #tpu.memory_space<vmem>>, vector<1x64xf32>,
    %c0_26 = arith.constant 0 : index
    %c0_27 = arith.constant 0 : index
    %37 = vector.load %arg17[%c0_26, %c0_27] : memref<16x64xf32, #tpu.memory_space<vmem>>, vector<16x64xf32>
    %38 = vector.broadcast %27 : vector<1x64xf32> to vector<16x64xf32>
    %39 = arith.mulf %38, %37 : vector<16x64xf32>
    %cst_28 = arith.constant dense<0.000000e+00> : vector<16x64xf32>
    %40 = tpu.matmul %19, %30, %cst_28 {dimension_numbers = #tpu.dot_dimension_numbers<[1], [0], [0], [1], [0, 0, 1, 1], [], []>} : vector<16x64xf32>, vector<64x64xf32>, vector<16x64xf32> -> vector<16x64xf32>
    %41 = arith.addf %39, %40 : vector<16x64xf32>
    %c0_29 = arith.constant 0 : index
    %c0_30 = arith.constant 0 : index
    %42 = vector.load %arg17[%c0_29, %c0_30] : memref<16x64xf32, #tpu.memory_space<vmem>>, vector<16x64xf32>
    tpu.vector_store %arg17[%c0_29, %c0_30], %41 {strides = array<i32>} : memref<16x64xf32, #tpu.memory_space<vmem>>, vector<16x64xf32>,
    %c0_31 = arith.constant 0 : index
    %c0_32 = arith.constant 0 : index
    %43 = vector.load %arg15[%c0_31, %c0_32] : memref<1x64xf32, #tpu.memory_space<vmem>>, vector<1x64xf32>
    tpu.vector_store %arg15[%c0_31, %c0_32], %25 {strides = array<i32>} : memref<1x64xf32, #tpu.memory_space<vmem>>, vector<1x64xf32>,
    %c0_i32_33 = arith.constant 0 : i32
    %44 = arith.cmpi eq, %arg2, %c0_i32_33 : i32
    %45 = arith.extui %44 : i1 to i32
    %c0_i32_34 = arith.constant 0 : i32
    %46 = arith.cmpi ne, %45, %c0_i32_34 : i32
    scf.if %46 {
      %c0_35 = arith.constant 0 : index
      %c0_36 = arith.constant 0 : index
      %47 = vector.load %arg16[%c0_35, %c0_36] : memref<1x64xf32, #tpu.memory_space<vmem>>, vector<1x64xf32>
      %48 = tpu.reciprocal %47 {approx = true} : vector<1x64xf32> -> vector<1x64xf32>
      %49 = arith.mulf %47, %48 : vector<1x64xf32>
      %cst_37 = arith.constant 2.000000e+00 : f32
      %50 = vector.broadcast %cst_37 : f32 to vector<1x64xf32>
      %51 = arith.subf %50, %49 : vector<1x64xf32>
      %52 = arith.mulf %48, %51 : vector<1x64xf32>
      %c0_38 = arith.constant 0 : index
      %c0_39 = arith.constant 0 : index
      %53 = vector.load %arg17[%c0_38, %c0_39] : memref<16x64xf32, #tpu.memory_space<vmem>>, vector<16x64xf32>
      %54 = vector.broadcast %52 : vector<1x64xf32> to vector<16x64xf32>
      %55 = arith.mulf %53, %54 : vector<16x64xf32>
      %c0_40 = arith.constant 0 : index
      %c0_41 = arith.constant 0 : index
      %c0_42 = arith.constant 0 : index
      %56 = vector.load %arg3[%c0_40, %c0_41, %c0_42] : memref<1x16x64xf32, #tpu.memory_space<vmem>>, vector<1x16x64xf32>
      %57 = vector.shape_cast %56 : vector<1x16x64xf32> to vector<16x64xf32>
      %58 = arith.addf %55, %57 : vector<16x64xf32>
      %c0_43 = arith.constant 0 : index
      %c0_44 = arith.constant 0 : index
      %c0_45 = arith.constant 0 : index
      %59 = vector.load %arg4[%c0_43, %c0_44, %c0_45] : memref<1x16x64xf32, #tpu.memory_space<vmem>>, vector<1x16x64xf32>
      %60 = vector.shape_cast %59 : vector<1x16x64xf32> to vector<16x64xf32>
      %61 = arith.addf %58, %60 : vector<16x64xf32>
      %c0_46 = arith.constant 0 : index
      %c0_47 = arith.constant 0 : index
      %c0_48 = arith.constant 0 : index
      %62 = vector.load %arg13[%c0_46, %c0_47, %c0_48] : memref<1x16x64xf32, #tpu.memory_space<vmem>>, vector<1x16x64xf32>
      %63 = vector.shape_cast %62 : vector<1x16x64xf32> to vector<16x64xf32>
      %64 = vector.shape_cast %61 : vector<16x64xf32> to vector<1x16x64xf32>
      tpu.vector_store %arg13[%c0_46, %c0_47, %c0_48], %64 {strides = array<i32>} : memref<1x16x64xf32, #tpu.memory_space<vmem>>, vector<1x16x64xf32>,
    } else {
    }
    return
  }
  func.func @transform_0(%arg0: i32, %arg1: i32, %arg2: i32) -> (i32, i32, i32) {
    %c0_i32 = arith.constant 0 : i32
    %c0_i32_0 = arith.constant 0 : i32
    return %arg0, %c0_i32, %arg1 : i32, i32, i32
  }
  func.func @transform_1(%arg0: i32, %arg1: i32, %arg2: i32) -> (i32, i32, i32) {
    %c0_i32 = arith.constant 0 : i32
    %c0_i32_0 = arith.constant 0 : i32
    return %arg0, %c0_i32, %arg1 : i32, i32, i32
  }
  func.func @transform_2(%arg0: i32, %arg1: i32, %arg2: i32) -> (i32, i32, i32) {
    %c0_i32 = arith.constant 0 : i32
    %c0_i32_0 = arith.constant 0 : i32
    return %arg0, %c0_i32, %arg2 : i32, i32, i32
  }
  func.func @transform_3(%arg0: i32, %arg1: i32, %arg2: i32) -> (i32, i32, i32) {
    %c0_i32 = arith.constant 0 : i32
    %c0_i32_0 = arith.constant 0 : i32
    return %arg0, %c0_i32, %arg2 : i32, i32, i32
  }
  func.func @transform_4(%arg0: i32, %arg1: i32, %arg2: i32) -> (i32, i32) {
    %c0_i32 = arith.constant 0 : i32
    %c0_i32_0 = arith.constant 0 : i32
    %c0_i32_1 = arith.constant 0 : i32
    return %c0_i32, %c0_i32_0 : i32, i32
  }
  func.func @transform_5(%arg0: i32, %arg1: i32, %arg2: i32) -> (i32, i32) {
    %c0_i32 = arith.constant 0 : i32
    %c0_i32_0 = arith.constant 0 : i32
    %c0_i32_1 = arith.constant 0 : i32
    return %c0_i32, %c0_i32_0 : i32, i32
  }
  func.func @transform_6(%arg0: i32, %arg1: i32, %arg2: i32) -> (i32, i32) {
    %c0_i32 = arith.constant 0 : i32
    %c0_i32_0 = arith.constant 0 : i32
    %c0_i32_1 = arith.constant 0 : i32
    return %c0_i32, %c0_i32_0 : i32, i32
  }
  func.func @transform_7(%arg0: i32, %arg1: i32, %arg2: i32) -> (i32, i32) {
    %c0_i32 = arith.constant 0 : i32
    %c0_i32_0 = arith.constant 0 : i32
    %c0_i32_1 = arith.constant 0 : i32
    return %c0_i32, %c0_i32_0 : i32, i32
  }
  func.func @transform_8(%arg0: i32, %arg1: i32, %arg2: i32) -> (i32, i32) {
    %c0_i32 = arith.constant 0 : i32
    %c0_i32_0 = arith.constant 0 : i32
    %c0_i32_1 = arith.constant 0 : i32
    return %c0_i32, %c0_i32_0 : i32, i32
  }
  func.func @transform_9(%arg0: i32, %arg1: i32, %arg2: i32) -> (i32, i32) {
    %c0_i32 = arith.constant 0 : i32
    %c0_i32_0 = arith.constant 0 : i32
    %c0_i32_1 = arith.constant 0 : i32
    return %c0_i32, %c0_i32_0 : i32, i32
  }
  func.func @transform_10(%arg0: i32, %arg1: i32, %arg2: i32) -> (i32, i32, i32) {
    %c0_i32 = arith.constant 0 : i32
    %c0_i32_0 = arith.constant 0 : i32
    return %arg0, %c0_i32, %arg1 : i32, i32, i32
  }
}

</mosaic_0001>

<llo_original>
// kernel: tpu_custom_call.1
$region0: #{tpu_custom_call.1}
  #allocation0 [shape = 'u32[]', space=smem, size = 0x4, offset = 0x4, fixed_abs, tag = 'smem constant byte address 0x4 - core index']
  #allocation1 [shape = 'u32[144,128]{1,0:T(1,128)}', space=vmem, size = 0x12000, scoped, tag = 'internal scratch']
  #allocation2 [shape = 'f32[2,64]{1,0:T(2,128)}', space=vmem, size = 0x400, scoped, tag = 'scratch operand']
  #allocation3 [shape = 'f32[1,64]{1,0:T(1,128)}', space=vmem, size = 0x200, scoped, tag = 'scratch operand']
  #allocation4 [shape = 'f32[1,64]{1,0:T(1,128)}', space=vmem, size = 0x200, scoped, tag = 'scratch operand']
  #allocation5 [shape = 'f32[16,64]{1,0:T(8,128)}', space=vmem, size = 0x2000, scoped, tag = 'scratch operand']
  %s0 = inlined_call_operand.vmem [shape: f32[2,16,64], index: 0, kind: input, shape index: {}]
  %s1 = inlined_call_operand.vmem [shape: f32[2,16,64], index: 1, kind: input, shape index: {}]
  %s2 = inlined_call_operand.hbm [shape: f32[2,16,64], index: 2, kind: input, shape index: {}]
  %s3 = inlined_call_operand.vmem [shape: f32[2,16,64], index: 3, kind: input, shape index: {}]
  %s4 = inlined_call_operand.hbm [shape: f32[2,16], index: 4, kind: input, shape index: {}]
  %s5 = inlined_call_operand.vmem [shape: f32[2,1], index: 5, kind: input, shape index: {}]
  %s6 = inlined_call_operand.hbm [shape: f32[16,16], index: 6, kind: input, shape index: {}]
  %s7 = inlined_call_operand.vmem [shape: f32[16,1], index: 7, kind: input, shape index: {}]
  %s8 = inlined_call_operand.vmem [shape: f32[18,16], index: 8, kind: input, shape index: {}]
  %s9 = inlined_call_operand.vmem [shape: f32[18,1], index: 9, kind: input, shape index: {}]
  %s10 = inlined_call_operand.hbm [shape: f32[2,16,64], index: 10, kind: output, shape index: {}]
  %s11 = sld [smem:[#allocation0]]
  $region93: #{tpu_custom_call.1} parent=0
    _
  %s13 = ssub.s32 1, %s11
  %s14 = scalar_select 0, %s13, %s11
  $region1: #{tpu_custom_call.1} parent=0
    #allocation6 [shape = 'u8[16384]{0}', space=vmem, size = 0x4000, scoped, tag = 'input window, operand 2']
    #allocation7 [shape = 's32[2]{0}', space=sflag, size = 0x8, scoped, tag = 'scoped memory for tpu_custom_call.1']
    #allocation8 [shape = 's32[2]{0}', space=sflag, size = 0x8, scoped, tag = 'scoped memory for tpu_custom_call.1']
    #allocation9 [shape = 'u8[1024]{0}', space=vmem, size = 0x400, scoped, tag = 'input window, operand 4, single buffered']
    #allocation10 [shape = 's32[1]{0}', space=sflag, size = 0x4, scoped, tag = 'scoped memory for tpu_custom_call.1']
    #allocation11 [shape = 'u8[8192]{0}', space=vmem, size = 0x2000, scoped, tag = 'input window, operand 6, single buffered']
    #allocation12 [shape = 'u8[16384]{0}', space=vmem, size = 0x4000, scoped, tag = 'output window, operand 0']
    %15 = vsyncpa [#allocation7], 0
    %s16 = scalar_lea.sflag [#allocation7], 1
    %17 = vsyncpa %s16, 0
    %18 = vsyncpa [#allocation10], 0
    %19 = vsyncpa [#allocation8], 0
    %s20 = scalar_lea.sflag [#allocation8], 1
    %21 = vsyncpa %s20, 0
    loop: start=0, step=1, limit=4
    $region2: #{tpu_custom_call.1} parent=1 // loop_pre_header
      _
    $region3: #{tpu_custom_call.1} parent=1 // loop_header
      %s23 = sphi 0, %s27
      %p24 = scmp.ge.s32.totalorder %s23, 4
      %s30 = sphi 0, %s49
      %s31 = sphi 0, %s45
      %s32 = sphi 0, %s41
      %s33 = sphi 0, %s30
      %s34 = sphi 0, %s31
      %s35 = sphi 0, %s32
      %s36 = sphi 0, %s33
      %s37 = sphi 0, %s34
      %s38 = sphi 0, %s35
      %s54 = sphi 0, %s56
      %s57 = sphi 0, %s54
      %s58 = sphi 0, %s57
      %s74 = sphi 0, %s58
      %s82 = sphi 0, %s84
      %s85 = sphi 0, %s82
      %s86 = sphi 0, %s85
      %s102 = sphi 0, %s86
      %s110 = sphi 0, %s112
      %s113 = sphi 0, %s110
      %s114 = sphi 0, %s113
      %s130 = sphi 0, %s114
      %s138 = sphi 0, %s140
      %s141 = sphi 0, %s138
      %s142 = sphi 0, %s141
      %s158 = sphi 0, %s142
      %s162 = sphi 0, %s162
      %s164 = sphi 0, %s162
      %s165 = sphi 0, %s164
      %s179 = sphi 0, %s165
      %s183 = sphi 0, %s183
      %s185 = sphi 0, %s183
      %s186 = sphi 0, %s185
      %s200 = sphi 0, %s186
      %s204 = sphi 0, %s204
      %s206 = sphi 0, %s204
      %s207 = sphi 0, %s206
      %s221 = sphi 0, %s207
      %s225 = sphi 0, %s225
      %s227 = sphi 0, %s225
      %s228 = sphi 0, %s227
      %s242 = sphi 0, %s228
      %s246 = sphi 0, %s246
      %s248 = sphi 0, %s246
      %s249 = sphi 0, %s248
      %s263 = sphi 0, %s249
      %s267 = sphi 0, %s267
      %s269 = sphi 0, %s267
      %s270 = sphi 0, %s269
      %s284 = sphi 0, %s270
      %s292 = sphi 0, %s294
      %s295 = sphi 0, %s292
      %s296 = sphi 0, %s295
      %s312 = sphi 0, %s296
    $region4: #{tpu_custom_call.1} parent=1 // loop_header_branch
      %26 = sbr.rel (%p24) target = $region8
    $region5: #{tpu_custom_call.1} parent=1 // loop_body
      %s28 = ssub.s32 %s23, 1
      %s29 = ssub.s32 %s23, 2
      %s39 = sadd.s32 1, %s32
      %p40 = scmp.ge.s32.totalorder %s39, 1
      %s41 = scalar_select %p40, 0, %s39
      %s42 = sadd.s32 1, %s31
      %s43 = scalar_select %p40, %s42, %s31
      %p44 = scmp.ge.s32.totalorder %s43, 1
      %s45 = scalar_select %p44, 0, %s43
      %s46 = sadd.s32 1, %s30
      %s47 = scalar_select %p44, %s46, %s30
      %p48 = scmp.ge.s32.totalorder %s47, 2
      %s49 = scalar_select %p48, 0, %s47
      %s50 = ssub.s32 %s30, %s49
      %s51 = ssub.s32 %s31, %s45
      %s52 = sor.u32 %s50, %s51
      %p53 = scmp.eq.s32.totalorder %s52, 0
      %s55 = sadd.s32 %s54, 1
      %s56 = scalar_select %p53, %s54, %s55
      %p59 = pneg %p53
      %p60 = scmp.eq.s32.totalorder %s23, 1
      %p61 = por %p59, %p60
      %p62 = scmp.ne.s32.totalorder %s54, %s57
      %p63 = scmp.eq.s32.totalorder %s23, 0
      %p64 = por %p62, %p63
      %p65 = scmp.ne.s32.totalorder %s54, %s57
      %p66 = scmp.eq.s32.totalorder %s28, 1
      %p67 = por %p65, %p66
      %p68 = scmp.ne.s32.totalorder %s57, %s58
      %p69 = scmp.eq.s32.totalorder %s28, 0
      %p70 = por %p68, %p69
      %p71 = scmp.ne.s32.totalorder %s57, %s58
      %p72 = scmp.eq.s32.totalorder %s29, 1
      %p73 = por %p71, %p72
      %p75 = scmp.ne.s32.totalorder %s58, %s74
      %p76 = scmp.eq.s32.totalorder %s29, 0
      %p77 = por %p75, %p76
      %s78 = ssub.s32 %s30, %s49
      %s79 = ssub.s32 %s31, %s45
      %s80 = sor.u32 %s78, %s79
      %p81 = scmp.eq.s32.totalorder %s80, 0
      %s83 = sadd.s32 %s82, 1
      %s84 = scalar_select %p81, %s82, %s83
      %p87 = pneg %p81
      %p88 = scmp.eq.s32.totalorder %s23, 1
      %p89 = por %p87, %p88
      %p90 = scmp.ne.s32.totalorder %s82, %s85
      %p91 = scmp.eq.s32.totalorder %s23, 0
      %p92 = por %p90, %p91
      %p93 = scmp.ne.s32.totalorder %s82, %s85
      %p94 = scmp.eq.s32.totalorder %s28, 1
      %p95 = por %p93, %p94
      %p96 = scmp.ne.s32.totalorder %s85, %s86
      %p97 = scmp.eq.s32.totalorder %s28, 0
      %p98 = por %p96, %p97
      %p99 = scmp.ne.s32.totalorder %s85, %s86
      %p100 = scmp.eq.s32.totalorder %s29, 1
      %p101 = por %p99, %p100
      %p103 = scmp.ne.s32.totalorder %s86, %s102
      %p104 = scmp.eq.s32.totalorder %s29, 0
      %p105 = por %p103, %p104
      %s106 = ssub.s32 %s30, %s49
      %s107 = ssub.s32 %s32, %s41
      %s108 = sor.u32 %s106, %s107
      %p109 = scmp.eq.s32.totalorder %s108, 0
      %s111 = sadd.s32 %s110, 1
      %s112 = scalar_select %p109, %s110, %s111
      %p115 = pneg %p109
      %p116 = scmp.eq.s32.totalorder %s23, 1
      %p117 = por %p115, %p116
      %p118 = scmp.ne.s32.totalorder %s110, %s113
      %p119 = scmp.eq.s32.totalorder %s23, 0
      %p120 = por %p118, %p119
      %p121 = scmp.ne.s32.totalorder %s110, %s113
      %p122 = scmp.eq.s32.totalorder %s28, 1
      %p123 = por %p121, %p122
      %p124 = scmp.ne.s32.totalorder %s113, %s114
      %p125 = scmp.eq.s32.totalorder %s28, 0
      %p126 = por %p124, %p125
      %p127 = scmp.ne.s32.totalorder %s113, %s114
      %p128 = scmp.eq.s32.totalorder %s29, 1
      %p129 = por %p127, %p128
      %p131 = scmp.ne.s32.totalorder %s114, %s130
      %p132 = scmp.eq.s32.totalorder %s29, 0
      %p133 = por %p131, %p132
      %s134 = ssub.s32 %s30, %s49
      %s135 = ssub.s32 %s32, %s41
      %s136 = sor.u32 %s134, %s135
      %p137 = scmp.eq.s32.totalorder %s136, 0
      %s139 = sadd.s32 %s138, 1
      %s140 = scalar_select %p137, %s138, %s139
      %p143 = pneg %p137
      %p144 = scmp.eq.s32.totalorder %s23, 1
      %p145 = por %p143, %p144
      %p146 = scmp.ne.s32.totalorder %s138, %s141
      %p147 = scmp.eq.s32.totalorder %s23, 0
      %p148 = por %p146, %p147
      %p149 = scmp.ne.s32.totalorder %s138, %s141
      %p150 = scmp.eq.s32.totalorder %s28, 1
      %p151 = por %p149, %p150
      %p152 = scmp.ne.s32.totalorder %s141, %s142
      %p153 = scmp.eq.s32.totalorder %s28, 0
      %p154 = por %p152, %p153
      %p155 = scmp.ne.s32.totalorder %s141, %s142
      %p156 = scmp.eq.s32.totalorder %s29, 1
      %p157 = por %p155, %p156
      %p159 = scmp.ne.s32.totalorder %s142, %s158
      %p160 = scmp.eq.s32.totalorder %s29, 0
      %p161 = por %p159, %p160
      %s163 = sadd.s32 %s162, 1
      %p166 = scmp.eq.s32.totalorder %s23, 1
      %p167 = scmp.ne.s32.totalorder %s162, %s164
      %p168 = scmp.eq.s32.totalorder %s23, 0
      %p169 = por %p167, %p168
      %p170 = scmp.ne.s32.totalorder %s162, %s164
      %p171 = scmp.eq.s32.totalorder %s28, 1
      %p172 = por %p170, %p171
      %p173 = scmp.ne.s32.totalorder %s164, %s165
      %p174 = scmp.eq.s32.totalorder %s28, 0
      %p175 = por %p173, %p174
      %p176 = scmp.ne.s32.totalorder %s164, %s165
      %p177 = scmp.eq.s32.totalorder %s29, 1
      %p178 = por %p176, %p177
      %p180 = scmp.ne.s32.totalorder %s165, %s179
      %p181 = scmp.eq.s32.totalorder %s29, 0
      %p182 = por %p180, %p181
      %s184 = sadd.s32 %s183, 1
      %p187 = scmp.eq.s32.totalorder %s23, 1
      %p188 = scmp.ne.s32.totalorder %s183, %s185
      %p189 = scmp.eq.s32.totalorder %s23, 0
      %p190 = por %p188, %p189
      %p191 = scmp.ne.s32.totalorder %s183, %s185
      %p192 = scmp.eq.s32.totalorder %s28, 1
      %p193 = por %p191, %p192
      %p194 = scmp.ne.s32.totalorder %s185, %s186
      %p195 = scmp.eq.s32.totalorder %s28, 0
      %p196 = por %p194, %p195
      %p197 = scmp.ne.s32.totalorder %s185, %s186
      %p198 = scmp.eq.s32.totalorder %s29, 1
      %p199 = por %p197, %p198
      %p201 = scmp.ne.s32.totalorder %s186, %s200
      %p202 = scmp.eq.s32.totalorder %s29, 0
      %p203 = por %p201, %p202
      %s205 = sadd.s32 %s204, 1
      %p208 = scmp.eq.s32.totalorder %s23, 1
      %p209 = scmp.ne.s32.totalorder %s204, %s206
      %p210 = scmp.eq.s32.totalorder %s23, 0
      %p211 = por %p209, %p210
      %p212 = scmp.ne.s32.totalorder %s204, %s206
      %p213 = scmp.eq.s32.totalorder %s28, 1
      %p214 = por %p212, %p213
      %p215 = scmp.ne.s32.totalorder %s206, %s207
      %p216 = scmp.eq.s32.totalorder %s28, 0
      %p217 = por %p215, %p216
      %p218 = scmp.ne.s32.totalorder %s206, %s207
      %p219 = scmp.eq.s32.totalorder %s29, 1
      %p220 = por %p218, %p219
      %p222 = scmp.ne.s32.totalorder %s207, %s221
      %p223 = scmp.eq.s32.totalorder %s29, 0
      %p224 = por %p222, %p223
      %s226 = sadd.s32 %s225, 1
      %p229 = scmp.eq.s32.totalorder %s23, 1
      %p230 = scmp.ne.s32.totalorder %s225, %s227
      %p231 = scmp.eq.s32.totalorder %s23, 0
      %p232 = por %p230, %p231
      %p233 = scmp.ne.s32.totalorder %s225, %s227
      %p234 = scmp.eq.s32.totalorder %s28, 1
      %p235 = por %p233, %p234
      %p236 = scmp.ne.s32.totalorder %s227, %s228
      %p237 = scmp.eq.s32.totalorder %s28, 0
      %p238 = por %p236, %p237
      %p239 = scmp.ne.s32.totalorder %s227, %s228
      %p240 = scmp.eq.s32.totalorder %s29, 1
      %p241 = por %p239, %p240
      %p243 = scmp.ne.s32.totalorder %s228, %s242
      %p244 = scmp.eq.s32.totalorder %s29, 0
      %p245 = por %p243, %p244
      %s247 = sadd.s32 %s246, 1
      %p250 = scmp.eq.s32.totalorder %s23, 1
      %p251 = scmp.ne.s32.totalorder %s246, %s248
      %p252 = scmp.eq.s32.totalorder %s23, 0
      %p253 = por %p251, %p252
      %p254 = scmp.ne.s32.totalorder %s246, %s248
      %p255 = scmp.eq.s32.totalorder %s28, 1
      %p256 = por %p254, %p255
      %p257 = scmp.ne.s32.totalorder %s248, %s249
      %p258 = scmp.eq.s32.totalorder %s28, 0
      %p259 = por %p257, %p258
      %p260 = scmp.ne.s32.totalorder %s248, %s249
      %p261 = scmp.eq.s32.totalorder %s29, 1
      %p262 = por %p260, %p261
      %p264 = scmp.ne.s32.totalorder %s249, %s263
      %p265 = scmp.eq.s32.totalorder %s29, 0
      %p266 = por %p264, %p265
      %s268 = sadd.s32 %s267, 1
      %p271 = scmp.eq.s32.totalorder %s23, 1
      %p272 = scmp.ne.s32.totalorder %s267, %s269
      %p273 = scmp.eq.s32.totalorder %s23, 0
      %p274 = por %p272, %p273
      %p275 = scmp.ne.s32.totalorder %s267, %s269
      %p276 = scmp.eq.s32.totalorder %s28, 1
      %p277 = por %p275, %p276
      %p278 = scmp.ne.s32.totalorder %s269, %s270
      %p279 = scmp.eq.s32.totalorder %s28, 0
      %p280 = por %p278, %p279
      %p281 = scmp.ne.s32.totalorder %s269, %s270
      %p282 = scmp.eq.s32.totalorder %s29, 1
      %p283 = por %p281, %p282
      %p285 = scmp.ne.s32.totalorder %s270, %s284
      %p286 = scmp.eq.s32.totalorder %s29, 0
      %p287 = por %p285, %p286
      %s288 = ssub.s32 %s30, %s49
      %s289 = ssub.s32 %s31, %s45
      %s290 = sor.u32 %s288, %s289
      %p291 = scmp.eq.s32.totalorder %s290, 0
      %s293 = sadd.s32 %s292, 1
      %s294 = scalar_select %p291, %s292, %s293
      %p297 = pneg %p291
      %p298 = scmp.eq.s32.totalorder %s23, 1
      %p299 = por %p297, %p298
      %p300 = scmp.ne.s32.totalorder %s292, %s295
      %p301 = scmp.eq.s32.totalorder %s23, 0
      %p302 = por %p300, %p301
      %p303 = scmp.ne.s32.totalorder %s292, %s295
      %p304 = scmp.eq.s32.totalorder %s28, 1
      %p305 = por %p303, %p304
      %p306 = scmp.ne.s32.totalorder %s295, %s296
      %p307 = scmp.eq.s32.totalorder %s28, 0
      %p308 = por %p306, %p307
      %p309 = scmp.ne.s32.totalorder %s295, %s296
      %p310 = scmp.eq.s32.totalorder %s29, 1
      %p311 = por %p309, %p310
      %p313 = scmp.ne.s32.totalorder %s296, %s312
      %p314 = scmp.eq.s32.totalorder %s29, 0
      %p315 = por %p313, %p314
      %p316 = scmp.le.s32.totalorder 1, %s23
      %p317 = scmp.lt.s32.totalorder %s23, 3
      %p318 = pnand %p316, %p317
      %p319 = pneg %p318
      // Predicated region
      $region9: #{tpu_custom_call.1} parent=5 // pred_check
        _
      $region10: #{tpu_custom_call.1} parent=5 // pred_check_branch
        %321 = sbr.rel (%p318) target = $region12
      $region11: #{tpu_custom_call.1} parent=5 // pred_region
        %s322 = ssub.s32 %s23, 1
        // Predicated region
        $region13: #{tpu_custom_call.1} parent=11 // pred_check
          %p323 = pneg %p175
        $region14: #{tpu_custom_call.1} parent=11 // pred_check_branch
          %325 = sbr.rel (%p323) target = $region16
        $region15: #{tpu_custom_call.1} parent=11 // pred_region
          %s327 = ssub.s32 32, 32
          %328 = vsyncadd [#allocation10], %s327
          %s330 = sshll.u32 [#allocation9], 4
          %s331 = int_to_ptr.vmem [resolvable:$true] %s330
          %333 = dma.hbm_to_vmem [thread:$0]  %s4, 32, %s331, [#allocation10]
        $region16: #{tpu_custom_call.1} parent=11 // pred_fallthru
          _
        // Predicated region
        $region17: #{tpu_custom_call.1} parent=11 // pred_check
          %p334 = pneg %p196
        $region18: #{tpu_custom_call.1} parent=11 // pred_check_branch
          %336 = sbr.rel (%p334) target = $region20
        $region19: #{tpu_custom_call.1} parent=11 // pred_region
          _
        $region20: #{tpu_custom_call.1} parent=11 // pred_fallthru
          _
        // Predicated region
        $region21: #{tpu_custom_call.1} parent=11 // pred_check
          %p337 = pneg %p217
        $region22: #{tpu_custom_call.1} parent=11 // pred_check_branch
          %339 = sbr.rel (%p337) target = $region24
        $region23: #{tpu_custom_call.1} parent=11 // pred_region
          %s341 = ssub.s32 256, 256
          %342 = vsyncadd [#allocation10], %s341
          %s343 = sshll.u32 [#allocation11], 4
          %s344 = int_to_ptr.vmem [resolvable:$true] %s343
          %349 = dma.hbm_to_vmem [thread:$0]  %s6, 256, %s344, [#allocation10], 128, 128, 8
        $region24: #{tpu_custom_call.1} parent=11 // pred_fallthru
          _
        // Predicated region
        $region25: #{tpu_custom_call.1} parent=11 // pred_check
          %p350 = pneg %p238
        $region26: #{tpu_custom_call.1} parent=11 // pred_check_branch
          %352 = sbr.rel (%p350) target = $region28
        $region27: #{tpu_custom_call.1} parent=11 // pred_region
          _
        $region28: #{tpu_custom_call.1} parent=11 // pred_fallthru
          _
        // Predicated region
        $region29: #{tpu_custom_call.1} parent=11 // pred_check
          %p353 = pneg %p259
        $region30: #{tpu_custom_call.1} parent=11 // pred_check_branch
          %355 = sbr.rel (%p353) target = $region32
        $region31: #{tpu_custom_call.1} parent=11 // pred_region
          _
        $region32: #{tpu_custom_call.1} parent=11 // pred_fallthru
          _
        // Predicated region
        $region33: #{tpu_custom_call.1} parent=11 // pred_check
          %p356 = pneg %p280
        $region34: #{tpu_custom_call.1} parent=11 // pred_check_branch
          %358 = sbr.rel (%p356) target = $region36
        $region35: #{tpu_custom_call.1} parent=11 // pred_region
          _
        $region36: #{tpu_custom_call.1} parent=11 // pred_fallthru
          _
      $region12: #{tpu_custom_call.1} parent=5 // pred_fallthru
        _
      %p359 = scmp.lt.s32.totalorder %s23, 2
      // Predicated region
      $region37: #{tpu_custom_call.1} parent=5 // pred_check
        %p360 = pneg %p359
      $region38: #{tpu_custom_call.1} parent=5 // pred_check_branch
        %362 = sbr.rel (%p360) target = $region40
      $region39: #{tpu_custom_call.1} parent=5 // pred_region
        // Predicated region
        $region41: #{tpu_custom_call.1} parent=39 // pred_check
          %p363 = pneg %p64
        $region42: #{tpu_custom_call.1} parent=39 // pred_check_branch
          %365 = sbr.rel (%p363) target = $region44
        $region43: #{tpu_custom_call.1} parent=39 // pred_region
          %p366 = scmp.lt.s32.totalorder %s30, 1
          %s367 = scalar_select %p366, %s30, 1
          %p368 = scmp.lt.s32.totalorder %s31, 0
          %s369 = scalar_select %p368, %s31, 0
          %s370 = smul.addr %s367, 2
          %s371 = sadd.s32 %s369, %s370
          %s372 = smul.addr %s371, 8
          %s373 = scalar_lea.vmem %s0, %s372
        $region44: #{tpu_custom_call.1} parent=39 // pred_fallthru
          _
        // Predicated region
        $region45: #{tpu_custom_call.1} parent=39 // pred_check
          %p374 = pneg %p92
        $region46: #{tpu_custom_call.1} parent=39 // pred_check_branch
          %376 = sbr.rel (%p374) target = $region48
        $region47: #{tpu_custom_call.1} parent=39 // pred_region
          %p377 = scmp.lt.s32.totalorder %s30, 1
          %s378 = scalar_select %p377, %s30, 1
          %p379 = scmp.lt.s32.totalorder %s31, 0
          %s380 = scalar_select %p379, %s31, 0
          %s381 = smul.addr %s378, 2
          %s382 = sadd.s32 %s380, %s381
          %s383 = smul.addr %s382, 8
          %s384 = scalar_lea.vmem %s1, %s383
        $region48: #{tpu_custom_call.1} parent=39 // pred_fallthru
          _
        // Predicated region
        $region49: #{tpu_custom_call.1} parent=39 // pred_check
          %p385 = pneg %p120
        $region50: #{tpu_custom_call.1} parent=39 // pred_check_branch
          %387 = sbr.rel (%p385) target = $region52
        $region51: #{tpu_custom_call.1} parent=39 // pred_region
          %s388 = sand.u32 %s110, 1
          %s389 = scalar_lea.sflag [#allocation7], %s388
          %s390 = sand.u32 %s110, 1
          %s391 = smul.addr %s390, 16
          %s392 = scalar_lea.vmem [#allocation6], %s391
          %s394 = ssub.s32 256, 256
          %395 = vsyncadd %s389, %s394
          %s396 = smul.addr %s30, 2
          %s397 = sadd.s32 %s32, %s396
          %s398 = smul.addr %s397, 128
          %s399 = scalar_lea.hbm %s2, %s398
          %s400 = sshll.u32 %s392, 4
          %s401 = int_to_ptr.vmem [resolvable:$true] %s400
          %406 = dma.hbm_to_vmem [thread:$0]  %s399, 256, %s401, %s389, 128, 128, 8
        $region52: #{tpu_custom_call.1} parent=39 // pred_fallthru
          _
        // Predicated region
        $region53: #{tpu_custom_call.1} parent=39 // pred_check
          %p407 = pneg %p148
        $region54: #{tpu_custom_call.1} parent=39 // pred_check_branch
          %409 = sbr.rel (%p407) target = $region56
        $region55: #{tpu_custom_call.1} parent=39 // pred_region
          %p410 = scmp.lt.s32.totalorder %s30, 1
          %s411 = scalar_select %p410, %s30, 1
          %p412 = scmp.lt.s32.totalorder %s32, 0
          %s413 = scalar_select %p412, %s32, 0
          %s414 = smul.addr %s411, 2
          %s415 = sadd.s32 %s413, %s414
          %s416 = smul.addr %s415, 8
          %s417 = scalar_lea.vmem %s3, %s416
        $region56: #{tpu_custom_call.1} parent=39 // pred_fallthru
          _
      $region40: #{tpu_custom_call.1} parent=5 // pred_fallthru
        _
      %p418 = scmp.le.s32.totalorder 1, %s23
      %p419 = scmp.lt.s32.totalorder %s23, 3
      %p420 = pnand %p418, %p419
      %p421 = pneg %p420
      // Predicated region
      $region57: #{tpu_custom_call.1} parent=5 // pred_check
        _
      $region58: #{tpu_custom_call.1} parent=5 // pred_check_branch
        %423 = sbr.rel (%p420) target = $region60
      $region59: #{tpu_custom_call.1} parent=5 // pred_region
        %s424 = ssub.s32 %s23, 1
        %s425 = sand.u32 %s113, 1
        %s426 = scalar_lea.sflag [#allocation7], %s425
        %s427 = sand.u32 %s113, 1
        %s428 = smul.addr %s427, 16
        %s429 = scalar_lea.vmem [#allocation6], %s428
        // Predicated region
        $region61: #{tpu_custom_call.1} parent=59 // pred_check
          %p430 = pneg %p126
        $region62: #{tpu_custom_call.1} parent=59 // pred_check_branch
          %432 = sbr.rel (%p430) target = $region64
        $region63: #{tpu_custom_call.1} parent=59 // pred_region
          %433 = dma.done %s426, 256
        $region64: #{tpu_custom_call.1} parent=59 // pred_fallthru
          _
        // Predicated region
        $region65: #{tpu_custom_call.1} parent=59 // pred_check
          %p434 = pneg %p175
        $region66: #{tpu_custom_call.1} parent=59 // pred_check_branch
          %436 = sbr.rel (%p434) target = $region68
        $region67: #{tpu_custom_call.1} parent=59 // pred_region
          %437 = dma.done [#allocation10], 32
        $region68: #{tpu_custom_call.1} parent=59 // pred_fallthru
          _
        // Predicated region
        $region69: #{tpu_custom_call.1} parent=59 // pred_check
          %p438 = pneg %p217
        $region70: #{tpu_custom_call.1} parent=59 // pred_check_branch
          %440 = sbr.rel (%p438) target = $region72
        $region71: #{tpu_custom_call.1} parent=59 // pred_region
          %441 = dma.done [#allocation10], 256
        $region72: #{tpu_custom_call.1} parent=59 // pred_fallthru
          _
        %p442 = scmp.lt.s32.totalorder %s33, 1
        %s443 = scalar_select %p442, %s33, 1
        %p444 = scmp.lt.s32.totalorder %s34, 0
        %s445 = scalar_select %p444, %s34, 0
        %s446 = smul.addr %s443, 2
        %s447 = sadd.s32 %s445, %s446
        %s448 = smul.addr %s447, 8
        %s449 = scalar_lea.vmem %s0, %s448
        %p450 = pneg %p70
        %p451 = pneg %p67
        %p452 = scmp.lt.s32.totalorder %s33, 1
        %s453 = scalar_select %p452, %s33, 1
        %p454 = scmp.lt.s32.totalorder %s34, 0
        %s455 = scalar_select %p454, %s34, 0
        %s456 = smul.addr %s453, 2
        %s457 = sadd.s32 %s455, %s456
        %s458 = smul.addr %s457, 8
        %s459 = scalar_lea.vmem %s1, %s458
        %p460 = pneg %p98
        %p461 = pneg %p95
        %s462 = sand.u32 %s113, 1
        %s463 = scalar_lea.sflag [#allocation7], %s462
        %s464 = sand.u32 %s113, 1
        %s465 = smul.addr %s464, 16
        %s466 = scalar_lea.vmem [#allocation6], %s465
        %p467 = pneg %p126
        %p468 = pneg %p123
        %p469 = scmp.lt.s32.totalorder %s33, 1
        %s470 = scalar_select %p469, %s33, 1
        %p471 = scmp.lt.s32.totalorder %s35, 0
        %s472 = scalar_select %p471, %s35, 0
        %s473 = smul.addr %s470, 2
        %s474 = sadd.s32 %s472, %s473
        %s475 = smul.addr %s474, 8
        %s476 = scalar_lea.vmem %s3, %s475
        %p477 = pneg %p154
        %p478 = pneg %p151
        %p479 = pneg %p175
        %p480 = pneg %p172
        %p481 = pneg %p196
        %p482 = pneg %p193
        %p483 = pneg %p217
        %p484 = pneg %p214
        %p485 = pneg %p238
        %p486 = pneg %p235
        %p487 = pneg %p259
        %p488 = pneg %p256
        %p489 = pneg %p280
        %p490 = pneg %p277
        %p491 = pneg %p308
        %p492 = pneg %p305
        %s493 = sand.u32 %s295, 1
        %s494 = scalar_lea.sflag [#allocation8], %s493
        %s495 = sand.u32 %s295, 1
        %s496 = smul.addr %s495, 16
        %s497 = scalar_lea.vmem [#allocation12], %s496
        %p498 = scmp.lt.s32.totalorder %s33, 1
        %s499 = scalar_select %p498, %s33, 1
        %p500 = scmp.lt.s32.totalorder %s34, 0
        %s501 = scalar_select %p500, %s34, 0
        %s502 = smul.addr %s499, 2
        %s503 = sadd.s32 %s501, %s502
        %s504 = smul.addr %s503, 8
        %s505 = scalar_lea.vmem %s0, %s504
        %p506 = scmp.lt.s32.totalorder %s33, 1
        %s507 = scalar_select %p506, %s33, 1
        %p508 = scmp.lt.s32.totalorder %s34, 0
        %s509 = scalar_select %p508, %s34, 0
        %s510 = smul.addr %s507, 2
        %s511 = sadd.s32 %s509, %s510
        %s512 = smul.addr %s511, 8
        %s513 = scalar_lea.vmem %s1, %s512
        %p514 = scmp.lt.s32.totalorder %s33, 1
        %s515 = scalar_select %p514, %s33, 1
        %p516 = scmp.lt.s32.totalorder %s35, 0
        %s517 = scalar_select %p516, %s35, 0
        %s518 = smul.addr %s515, 2
        %s519 = sadd.s32 %s517, %s518
        %s520 = smul.addr %s519, 8
        %s521 = scalar_lea.vmem %s3, %s520
        %p522 = scmp.eq.s32.totalorder %s35, 0
        // Predicated region
        $region73: #{tpu_custom_call.1} parent=59 // pred_check
          %p523 = pneg %p522
        $region74: #{tpu_custom_call.1} parent=59 // pred_check_branch
          %525 = sbr.rel (%p523) target = $region76
        $region75: #{tpu_custom_call.1} parent=59 // pred_region
          %v526 = vld [vmem:[#allocation9] sm:$0x3]
          %v527 = vld [vmem:[%s505] sm:$0xff]
          %v528 = vld [vmem:[%s505 + $0x8] sm:$0xff]
          %v529 = vld [vmem:[%s5] sm:$0x3]
          %531 = vset.pattern.permute.xlu0 0
          %532 = vperm.xlu0 %531, %v529
          %v533 = vpop.permute.xlu0 %532
          %vm535 = vcmask 130048
          %v537 = vsel %vm535, %v526, 0
          %539 = vmatprep.subr.mxu0 0.0
          %540 = vmatpush1.msra.mxu0 %v527
          %541 = vmatprep.subr.mxu0 0.0
          %542 = vmatpush1.msra.mxu0 %v528
          %543 = vmatprep.subr.mxu0 0.0
          %544 = vmatpush1.msra.mxu0 0.0
          %545 = vmatprep.subr.mxu0 0.0
          %546 = vmatpush1.msra.mxu0 0.0
          %547 = vmatprep.subr.mxu0 0.0
          %548 = vmatpush1.msra.mxu0 0.0
          %549 = vmatprep.subr.mxu0 0.0
          %550 = vmatpush1.msra.mxu0 0.0
          %551 = vmatprep.subr.mxu0 0.0
          %552 = vmatpush1.msra.mxu0 0.0
          %553 = vmatprep.subr.mxu0 0.0
          %554 = vmatpush1.msra.mxu0 0.0
          %555 = vmatprep.subr.mxu0 0.0
          %556 = vmatpush1.msra.mxu0 0.0
          %557 = vmatprep.subr.mxu0 0.0
          %558 = vmatpush1.msra.mxu0 0.0
          %559 = vmatprep.subr.mxu0 0.0
          %560 = vmatpush1.msra.mxu0 0.0
          %561 = vmatprep.subr.mxu0 0.0
          %562 = vmatpush1.msra.mxu0 0.0
          %563 = vmatprep.subr.mxu0 0.0
          %564 = vmatpush1.msra.mxu0 0.0
          %565 = vmatprep.subr.mxu0 0.0
          %566 = vmatpush1.msra.mxu0 0.0
          %567 = vmatprep.subr.mxu0 0.0
          %568 = vmatpush1.msra.mxu0 0.0
          %569 = vmatprep.subr.mxu0 0.0
          %570 = vmatpush1.msra.mxu0 0.0
          %571 = vmatprep.subr.mxu0 0.0
          %572 = vmatpush1.msra.mxu0 0.0
          %573 = vmatprep.subr.mxu0 0.0
          %574 = vmatpush1.msra.mxu0 0.0
          %575 = vmatprep.subr.mxu0 0.0
          %576 = vmatpush1.msra.mxu0 0.0
          %577 = vmatprep.subr.mxu0 0.0
          %578 = vmatpush1.msra.mxu0 0.0
          %579 = vmatprep.subr.mxu0 0.0
          %580 = vmatpush1.msra.mxu0 0.0
          %581 = vmatprep.subr.mxu0 0.0
          %582 = vmatpush1.msra.mxu0 0.0
          %583 = vmatprep.subr.mxu0 0.0
          %584 = vmatpush1.msra.mxu0 0.0
          %585 = vmatprep.subr.mxu0 0.0
          %586 = vmatpush1.msra.mxu0 0.0
          %587 = vmatprep.subr.mxu0 0.0
          %588 = vmatpush1.msra.mxu0 0.0
          %589 = vmatprep.subr.mxu0 0.0
          %590 = vmatpush1.msra.mxu0 0.0
          %591 = vmatprep.subr.mxu0 0.0
          %592 = vmatpush1.msra.mxu0 0.0
          %593 = vmatprep.subr.mxu0 0.0
          %594 = vmatpush1.msra.mxu0 0.0
          %595 = vmatprep.subr.mxu0 0.0
          %596 = vmatpush1.msra.mxu0 0.0
          %597 = vmatprep.subr.mxu0 0.0
          %598 = vmatpush1.msra.mxu0 0.0
          %599 = vmatprep.subr.mxu0 0.0
          %600 = vmatpush1.msra.mxu0 0.0
          %601 = vmatprep.subr.mxu0 0.0
          %602 = vmatpush1.msra.mxu0 0.0
          %603 = vmatprep.mubr.f32.mxu0 0.0
          %604 = vmatmul.mubr.f32.gmra.mrb[0].mxu0 %v537
          %v605 = vpop.f32.mrb[0].mxu0
          %v606 = vadd.f32 %v533, %v605
          %v607 = vpop.f32.mrb[0].mxu0
          %608 = vdwg.mxu0
          %v609 = vmul.f32 %v606, 0.70710677
          %vm610 = vcmask 517120
          %611 = vst.msk [vmem:[#allocation2] sm:$0x3] %vm610, %v609
          %vm612 = vcmask 516096
          %613 = vst.msk [vmem:[#allocation3] sm:$0x1] %vm612, -inf
          %614 = vst.msk [vmem:[#allocation4] sm:$0x1] %vm612, 0.0
          %vm615 = vcmask 523264
          %616 = vst.msk [vmem:[#allocation5] sm:$0xff] %vm615, 0.0
          %617 = vst.msk [vmem:[#allocation5 + $0x8] sm:$0xff] %vm615, 0.0
        $region76: #{tpu_custom_call.1} parent=59 // pred_fallthru
          _
        %v618 = vld [vmem:[%s429] sm:$0xff]
        %v619 = vld [vmem:[%s429 + $0x8] sm:$0xff]
        %v620 = vld [vmem:[%s521] sm:$0xff]
        %v621 = vld [vmem:[%s521 + $0x8] sm:$0xff]
        %v622 = vld [vmem:[%s8] sm:$0xff]
        %v623 = vld [vmem:[%s8 + $0x8] sm:$0xff]
        %v624 = vld [vmem:[%s8 + $0x10] sm:$0x3]
        %v625 = vld [vmem:[%s9] sm:$0xff]
        %v626 = vld [vmem:[%s9 + $0x8] sm:$0xff]
        %v627 = vld [vmem:[%s9 + $0x10] sm:$0x3]
        %629 = vset.pattern.permute.xlu0 0
        %630 = vperm.xlu0 %629, %v625
        %v631 = vpop.permute.xlu0 %630
        %634 = vset.pattern.permute.xlu0 0
        %635 = vperm.xlu0 %634, %v626
        %v636 = vpop.permute.xlu0 %635
        %639 = vset.pattern.permute.xlu0 0
        %640 = vperm.xlu0 %639, %v627
        %v641 = vpop.permute.xlu0 %640
        %vm643 = vcmask 130048
        %v645 = vsel %vm643, %v622, 0
        %v648 = vsel %vm643, %v623, 0
        %v651 = vsel %vm643, %v624, 0
        %653 = vmatprep.subr.mxu0 0.0
        %654 = vmatpush1.msra.mxu0 %v620
        %655 = vmatprep.subr.mxu0 0.0
        %656 = vmatpush1.msra.mxu0 %v621
        %657 = vmatprep.subr.mxu0 0.0
        %658 = vmatpush1.msra.mxu0 0.0
        %659 = vmatprep.subr.mxu0 0.0
        %660 = vmatpush1.msra.mxu0 0.0
        %661 = vmatprep.subr.mxu0 0.0
        %662 = vmatpush1.msra.mxu0 0.0
        %663 = vmatprep.subr.mxu0 0.0
        %664 = vmatpush1.msra.mxu0 0.0
        %665 = vmatprep.subr.mxu0 0.0
        %666 = vmatpush1.msra.mxu0 0.0
        %667 = vmatprep.subr.mxu0 0.0
        %668 = vmatpush1.msra.mxu0 0.0
        %669 = vmatprep.subr.mxu0 0.0
        %670 = vmatpush1.msra.mxu0 0.0
        %671 = vmatprep.subr.mxu0 0.0
        %672 = vmatpush1.msra.mxu0 0.0
        %673 = vmatprep.subr.mxu0 0.0
        %674 = vmatpush1.msra.mxu0 0.0
        %675 = vmatprep.subr.mxu0 0.0
        %676 = vmatpush1.msra.mxu0 0.0
        %677 = vmatprep.subr.mxu0 0.0
        %678 = vmatpush1.msra.mxu0 0.0
        %679 = vmatprep.subr.mxu0 0.0
        %680 = vmatpush1.msra.mxu0 0.0
        %681 = vmatprep.subr.mxu0 0.0
        %682 = vmatpush1.msra.mxu0 0.0
        %683 = vmatprep.subr.mxu0 0.0
        %684 = vmatpush1.msra.mxu0 0.0
        %685 = vmatprep.subr.mxu0 0.0
        %686 = vmatpush1.msra.mxu0 0.0
        %687 = vmatprep.subr.mxu0 0.0
        %688 = vmatpush1.msra.mxu0 0.0
        %689 = vmatprep.subr.mxu0 0.0
        %690 = vmatpush1.msra.mxu0 0.0
        %691 = vmatprep.subr.mxu0 0.0
        %692 = vmatpush1.msra.mxu0 0.0
        %693 = vmatprep.subr.mxu0 0.0
        %694 = vmatpush1.msra.mxu0 0.0
        %695 = vmatprep.subr.mxu0 0.0
        %696 = vmatpush1.msra.mxu0 0.0
        %697 = vmatprep.subr.mxu0 0.0
        %698 = vmatpush1.msra.mxu0 0.0
        %699 = vmatprep.subr.mxu0 0.0
        %700 = vmatpush1.msra.mxu0 0.0
        %701 = vmatprep.subr.mxu0 0.0
        %702 = vmatpush1.msra.mxu0 0.0
        %703 = vmatprep.subr.mxu0 0.0
        %704 = vmatpush1.msra.mxu0 0.0
        %705 = vmatprep.subr.mxu0 0.0
        %706 = vmatpush1.msra.mxu0 0.0
        %707 = vmatprep.subr.mxu0 0.0
        %708 = vmatpush1.msra.mxu0 0.0
        %709 = vmatprep.subr.mxu0 0.0
        %710 = vmatpush1.msra.mxu0 0.0
        %711 = vmatprep.subr.mxu0 0.0
        %712 = vmatpush1.msra.mxu0 0.0
        %713 = vmatprep.subr.mxu0 0.0
        %714 = vmatpush1.msra.mxu0 0.0
        %715 = vmatprep.subr.mxu0 0.0
        %716 = vmatpush1.msra.mxu0 0.0
        %717 = vmatprep.mubr.f32.mxu0 0.0
        %718 = vmatmul.mubr.f32.gmra.mrb[0].mxu0 %v645
        %v719 = vpop.f32.mrb[0].mxu0
        %v720 = vadd.f32 %v631, %v719
        %v721 = vpop.f32.mrb[0].mxu0
        %722 = vmatprep.mubr.f32.mxu0 0.0
        %723 = vmatmul.mubr.f32.gmra.mrb[0].mxu0 %v648
        %v724 = vpop.f32.mrb[0].mxu0
        %v725 = vadd.f32 %v636, %v724
        %v726 = vpop.f32.mrb[0].mxu0
        %727 = vmatprep.mubr.f32.mxu0 0.0
        %728 = vmatmul.mubr.f32.gmra.mrb[0].mxu0 %v651
        %v729 = vpop.f32.mrb[0].mxu0
        %v730 = vadd.f32 %v641, %v729
        %v731 = vpop.f32.mrb[0].mxu0
        %732 = vdwg.mxu0
        %v733 = vld [vmem:[#allocation11] sm:$0xff]
        %v734 = vld [vmem:[#allocation11 + $0x8] sm:$0xff]
        %v735 = vld [vmem:[%s7] sm:$0xff]
        %v736 = vld [vmem:[%s7 + $0x8] sm:$0xff]
        %738 = vset.pattern.permute.xlu0 0
        %739 = vperm.xlu0 %738, %v735
        %v740 = vpop.permute.xlu0 %739
        %743 = vset.pattern.permute.xlu0 0
        %744 = vperm.xlu0 %743, %v736
        %v745 = vpop.permute.xlu0 %744
        %v748 = vsel %vm643, %v733, 0
        %v751 = vsel %vm643, %v734, 0
        %753 = vmatprep.subr.mxu0 0.0
        %754 = vmatpush1.msra.mxu0 %v618
        %755 = vmatprep.subr.mxu0 0.0
        %756 = vmatpush1.msra.mxu0 %v619
        %757 = vmatprep.subr.mxu0 0.0
        %758 = vmatpush1.msra.mxu0 0.0
        %759 = vmatprep.subr.mxu0 0.0
        %760 = vmatpush1.msra.mxu0 0.0
        %761 = vmatprep.subr.mxu0 0.0
        %762 = vmatpush1.msra.mxu0 0.0
        %763 = vmatprep.subr.mxu0 0.0
        %764 = vmatpush1.msra.mxu0 0.0
        %765 = vmatprep.subr.mxu0 0.0
        %766 = vmatpush1.msra.mxu0 0.0
        %767 = vmatprep.subr.mxu0 0.0
        %768 = vmatpush1.msra.mxu0 0.0
        %769 = vmatprep.subr.mxu0 0.0
        %770 = vmatpush1.msra.mxu0 0.0
        %771 = vmatprep.subr.mxu0 0.0
        %772 = vmatpush1.msra.mxu0 0.0
        %773 = vmatprep.subr.mxu0 0.0
        %774 = vmatpush1.msra.mxu0 0.0
        %775 = vmatprep.subr.mxu0 0.0
        %776 = vmatpush1.msra.mxu0 0.0
        %777 = vmatprep.subr.mxu0 0.0
        %778 = vmatpush1.msra.mxu0 0.0
        %779 = vmatprep.subr.mxu0 0.0
        %780 = vmatpush1.msra.mxu0 0.0
        %781 = vmatprep.subr.mxu0 0.0
        %782 = vmatpush1.msra.mxu0 0.0
        %783 = vmatprep.subr.mxu0 0.0
        %784 = vmatpush1.msra.mxu0 0.0
        %785 = vmatprep.subr.mxu0 0.0
        %786 = vmatpush1.msra.mxu0 0.0
        %787 = vmatprep.subr.mxu0 0.0
        %788 = vmatpush1.msra.mxu0 0.0
        %789 = vmatprep.subr.mxu0 0.0
        %790 = vmatpush1.msra.mxu0 0.0
        %791 = vmatprep.subr.mxu0 0.0
        %792 = vmatpush1.msra.mxu0 0.0
        %793 = vmatprep.subr.mxu0 0.0
        %794 = vmatpush1.msra.mxu0 0.0
        %795 = vmatprep.subr.mxu0 0.0
        %796 = vmatpush1.msra.mxu0 0.0
        %797 = vmatprep.subr.mxu0 0.0
        %798 = vmatpush1.msra.mxu0 0.0
        %799 = vmatprep.subr.mxu0 0.0
        %800 = vmatpush1.msra.mxu0 0.0
        %801 = vmatprep.subr.mxu0 0.0
        %802 = vmatpush1.msra.mxu0 0.0
        %803 = vmatprep.subr.mxu0 0.0
        %804 = vmatpush1.msra.mxu0 0.0
        %805 = vmatprep.subr.mxu0 0.0
        %806 = vmatpush1.msra.mxu0 0.0
        %807 = vmatprep.subr.mxu0 0.0
        %808 = vmatpush1.msra.mxu0 0.0
        %809 = vmatprep.subr.mxu0 0.0
        %810 = vmatpush1.msra.mxu0 0.0
        %811 = vmatprep.subr.mxu0 0.0
        %812 = vmatpush1.msra.mxu0 0.0
        %813 = vmatprep.subr.mxu0 0.0
        %814 = vmatpush1.msra.mxu0 0.0
        %815 = vmatprep.subr.mxu0 0.0
        %816 = vmatpush1.msra.mxu0 0.0
        %817 = vmatprep.mubr.f32.mxu0 0.0
        %818 = vmatmul.mubr.f32.gmra.mrb[0].mxu0 %v748
        %v819 = vpop.f32.mrb[0].mxu0
        %v820 = vadd.f32 %v740, %v819
        %v821 = vpop.f32.mrb[0].mxu0
        %822 = vmatprep.mubr.f32.mxu0 0.0
        %823 = vmatmul.mubr.f32.gmra.mrb[0].mxu0 %v751
        %v824 = vpop.f32.mrb[0].mxu0
        %v825 = vadd.f32 %v745, %v824
        %v826 = vpop.f32.mrb[0].mxu0
        %827 = vdwg.mxu0
        %v828 = vadd.f32 %v820, %v720
        %v829 = vadd.f32 %v825, %v725
        %v830 = vld [vmem:[#allocation2] sm:$0x3]
        %831 = vxpose.xlu0.b32.start [1/16] %v730, 128
        %832 = vxpose.xlu0.b32.cont [2/16] 0.0, 128
        %833 = vxpose.xlu0.b32.cont [3/16] 0.0, 128
        %834 = vxpose.xlu0.b32.cont [4/16] 0.0, 128
        %835 = vxpose.xlu0.b32.cont [5/16] 0.0, 128
        %836 = vxpose.xlu0.b32.cont [6/16] 0.0, 128
        %837 = vxpose.xlu0.b32.cont [7/16] 0.0, 128
        %838 = vxpose.xlu0.b32.cont [8/16] 0.0, 128
        %839 = vxpose.xlu0.b32.cont [9/16] 0.0, 128
        %840 = vxpose.xlu0.b32.cont [10/16] 0.0, 128
        %841 = vxpose.xlu0.b32.cont [11/16] 0.0, 128
        %842 = vxpose.xlu0.b32.cont [12/16] 0.0, 128
        %843 = vxpose.xlu0.b32.cont [13/16] 0.0, 128
        %844 = vxpose.xlu0.b32.cont [14/16] 0.0, 128
        %845 = vxpose.xlu0.b32.cont [15/16] 0.0, 128
        %846 = vxpose.xlu0.b32.end [16/16] 0.0, 128
        %v847 = vpop.trf.xlu0
        %v848 = vpop.trf.xlu0
        %v849 = vpop.trf.xlu0
        %v850 = vpop.trf.xlu0
        %v851 = vpop.trf.xlu0
        %v852 = vpop.trf.xlu0
        %v853 = vpop.trf.xlu0
        %v854 = vpop.trf.xlu0
        %v855 = vpop.trf.xlu0
        %v856 = vpop.trf.xlu0
        %v857 = vpop.trf.xlu0
        %v858 = vpop.trf.xlu0
        %v859 = vpop.trf.xlu0
        %v860 = vpop.trf.xlu0
        %v861 = vpop.trf.xlu0
        %v862 = vpop.trf.xlu0
        %vm863 = vcmask 15360
        %v865 = vsel %vm863, %v847, 0
        %v868 = vsel %vm863, %v848, 0
        %v871 = vsel %vm863, %v849, 0
        %v874 = vsel %vm863, %v850, 0
        %v877 = vsel %vm863, %v851, 0
        %v880 = vsel %vm863, %v852, 0
        %v883 = vsel %vm863, %v853, 0
        %v886 = vsel %vm863, %v854, 0
        %vm888 = vcmask 1041408
        %v890 = vsel %vm888, %v830, 0
        %892 = vmatprep.subr.mxu0 0.0
        %893 = vmatpush1.msra.mxu0 %v890
        %894 = vmatprep.subr.mxu0 0.0
        %895 = vmatpush1.msra.mxu0 0.0
        %896 = vmatprep.subr.mxu0 0.0
        %897 = vmatpush1.msra.mxu0 0.0
        %898 = vmatprep.subr.mxu0 0.0
        %899 = vmatpush1.msra.mxu0 0.0
        %900 = vmatprep.subr.mxu0 0.0
        %901 = vmatpush1.msra.mxu0 0.0
        %902 = vmatprep.subr.mxu0 0.0
        %903 = vmatpush1.msra.mxu0 0.0
        %904 = vmatprep.subr.mxu0 0.0
        %905 = vmatpush1.msra.mxu0 0.0
        %906 = vmatprep.subr.mxu0 0.0
        %907 = vmatpush1.msra.mxu0 0.0
        %908 = vmatprep.subr.mxu0 0.0
        %909 = vmatpush1.msra.mxu0 0.0
        %910 = vmatprep.subr.mxu0 0.0
        %911 = vmatpush1.msra.mxu0 0.0
        %912 = vmatprep.subr.mxu0 0.0
        %913 = vmatpush1.msra.mxu0 0.0
        %914 = vmatprep.subr.mxu0 0.0
        %915 = vmatpush1.msra.mxu0 0.0
        %916 = vmatprep.subr.mxu0 0.0
        %917 = vmatpush1.msra.mxu0 0.0
        %918 = vmatprep.subr.mxu0 0.0
        %919 = vmatpush1.msra.mxu0 0.0
        %920 = vmatprep.subr.mxu0 0.0
        %921 = vmatpush1.msra.mxu0 0.0
        %922 = vmatprep.subr.mxu0 0.0
        %923 = vmatpush1.msra.mxu0 0.0
        %924 = vmatprep.subr.mxu0 0.0
        %925 = vmatpush1.msra.mxu0 0.0
        %926 = vmatprep.subr.mxu0 0.0
        %927 = vmatpush1.msra.mxu0 0.0
        %928 = vmatprep.subr.mxu0 0.0
        %929 = vmatpush1.msra.mxu0 0.0
        %930 = vmatprep.subr.mxu0 0.0
        %931 = vmatpush1.msra.mxu0 0.0
        %932 = vmatprep.subr.mxu0 0.0
        %933 = vmatpush1.msra.mxu0 0.0
        %934 = vmatprep.subr.mxu0 0.0
        %935 = vmatpush1.msra.mxu0 0.0
        %936 = vmatprep.subr.mxu0 0.0
        %937 = vmatpush1.msra.mxu0 0.0
        %938 = vmatprep.subr.mxu0 0.0
        %939 = vmatpush1.msra.mxu0 0.0
        %940 = vmatprep.subr.mxu0 0.0
        %941 = vmatpush1.msra.mxu0 0.0
        %942 = vmatprep.subr.mxu0 0.0
        %943 = vmatpush1.msra.mxu0 0.0
        %944 = vmatprep.subr.mxu0 0.0
        %945 = vmatpush1.msra.mxu0 0.0
        %946 = vmatprep.subr.mxu0 0.0
        %947 = vmatpush1.msra.mxu0 0.0
        %948 = vmatprep.subr.mxu0 0.0
        %949 = vmatpush1.msra.mxu0 0.0
        %950 = vmatprep.subr.mxu0 0.0
        %951 = vmatpush1.msra.mxu0 0.0
        %952 = vmatprep.subr.mxu0 0.0
        %953 = vmatpush1.msra.mxu0 0.0
        %954 = vmatprep.subr.mxu0 0.0
        %955 = vmatpush1.msra.mxu0 0.0
        %956 = vmatprep.mubr.f32.mxu0 0.0
        %957 = vmatmul.mubr.f32.gmra.mrb[0].mxu0 %v865
        %v958 = vpop.f32.mrb[0].mxu0
        %v959 = vadd.f32 0.0, %v958
        %v960 = vpop.f32.mrb[0].mxu0
        %961 = vmatprep.mubr.f32.mxu0 0.0
        %962 = vmatmul.mubr.f32.gmra.mrb[0].mxu0 %v868
        %v963 = vpop.f32.mrb[0].mxu0
        %v964 = vadd.f32 0.0, %v963
        %v965 = vpop.f32.mrb[0].mxu0
        %966 = vmatprep.mubr.f32.mxu0 0.0
        %967 = vmatmul.mubr.f32.gmra.mrb[0].mxu0 %v871
        %v968 = vpop.f32.mrb[0].mxu0
        %v969 = vadd.f32 0.0, %v968
        %v970 = vpop.f32.mrb[0].mxu0
        %971 = vmatprep.mubr.f32.mxu0 0.0
        %972 = vmatmul.mubr.f32.gmra.mrb[0].mxu0 %v874
        %v973 = vpop.f32.mrb[0].mxu0
        %v974 = vadd.f32 0.0, %v973
        %v975 = vpop.f32.mrb[0].mxu0
        %976 = vmatprep.mubr.f32.mxu0 0.0
        %977 = vmatmul.mubr.f32.gmra.mrb[0].mxu0 %v877
        %v978 = vpop.f32.mrb[0].mxu0
        %v979 = vadd.f32 0.0, %v978
        %v980 = vpop.f32.mrb[0].mxu0
        %981 = vmatprep.mubr.f32.mxu0 0.0
        %982 = vmatmul.mubr.f32.gmra.mrb[0].mxu0 %v880
        %v983 = vpop.f32.mrb[0].mxu0
        %v984 = vadd.f32 0.0, %v983
        %v985 = vpop.f32.mrb[0].mxu0
        %986 = vmatprep.mubr.f32.mxu0 0.0
        %987 = vmatmul.mubr.f32.gmra.mrb[0].mxu0 %v883
        %v988 = vpop.f32.mrb[0].mxu0
        %v989 = vadd.f32 0.0, %v988
        %v990 = vpop.f32.mrb[0].mxu0
        %991 = vmatprep.mubr.f32.mxu0 0.0
        %992 = vmatmul.mubr.f32.gmra.mrb[0].mxu0 %v886
        %v993 = vpop.f32.mrb[0].mxu0
        %v994 = vadd.f32 0.0, %v993
        %v995 = vpop.f32.mrb[0].mxu0
        %996 = vdwg.mxu0
        %v997 = vld [vmem:[#allocation3] sm:$0x1]
        %vm998 = vcmask 523264
        %v999 = vsel %vm998, %v959, -inf
        %v1000 = vsel %vm998, %v964, -inf
        %v1001 = vsel %vm998, %v969, -inf
        %v1002 = vsel %vm998, %v974, -inf
        %v1003 = vsel %vm998, %v979, -inf
        %v1004 = vmax.f32 %v999, %v1003
        %v1005 = vsel %vm998, %v984, -inf
        %v1006 = vmax.f32 %v1000, %v1005
        %v1007 = vsel %vm998, %v989, -inf
        %v1008 = vmax.f32 %v1001, %v1007
        %v1009 = vsel %vm998, %v994, -inf
        %v1010 = vmax.f32 %v1002, %v1009
        %v1011 = vmax.f32 %v1004, %v1006
        %v1012 = vmax.f32 %v1008, %v1010
        %v1013 = vmax.f32 %v1011, %v1012
        %v1014 = vrot.slane %v1013, 4
        %v1015 = vmax.f32 %v1013, %v1014
        %v1016 = vrot.slane %v1015, 2
        %v1017 = vmax.f32 %v1015, %v1016
        %v1018 = vrot.slane %v1017, 1
        %v1019 = vmax.f32 %v1017, %v1018
        %v1020 = vmax.f32 %v997, %v1019
        %v1021 = vsub.f32 %v997, %v1020
        %v1022 = vmul.f32 %v1021, 1.442695
        %v1023 = vpow.pop %v1022
        %v1025 = vlaneseq
        %v1026 = vshrl.u32 %v1025, 7
        %v1027 = vsub.s32 0, %v1026
        %v1028 = vrot.slane %v1020, %v1027
        %v1030 = vsub.f32 %v959, %v1028
        %v1031 = vsub.f32 %v964, %v1028
        %v1032 = vsub.f32 %v969, %v1028
        %v1033 = vsub.f32 %v974, %v1028
        %v1034 = vsub.f32 %v979, %v1028
        %v1035 = vsub.f32 %v984, %v1028
        %v1036 = vsub.f32 %v989, %v1028
        %v1037 = vsub.f32 %v994, %v1028
        %v1038 = vmul.f32 %v1030, 1.442695
        %v1039 = vpow.pop %v1038
        %v1040 = vmul.f32 %v1031, 1.442695
        %v1041 = vpow.pop %v1040
        %v1042 = vmul.f32 %v1032, 1.442695
        %v1043 = vpow.pop %v1042
        %v1044 = vmul.f32 %v1033, 1.442695
        %v1045 = vpow.pop %v1044
        %v1046 = vmul.f32 %v1034, 1.442695
        %v1047 = vpow.pop %v1046
        %v1048 = vmul.f32 %v1035, 1.442695
        %v1049 = vpow.pop %v1048
        %v1050 = vmul.f32 %v1036, 1.442695
        %v1051 = vpow.pop %v1050
        %v1052 = vmul.f32 %v1037, 1.442695
        %v1053 = vpow.pop %v1052
        %v1054 = vld [vmem:[#allocation4] sm:$0x1]
        %v1055 = vmul.f32 %v1023, %v1054
        %v1056 = vsel %vm998, %v1039, 0.0
        %v1057 = vsel %vm998, %v1041, 0.0
        %v1058 = vadd.f32 %v1056, %v1057
        %v1059 = vsel %vm998, %v1043, 0.0
        %v1060 = vadd.f32 %v1058, %v1059
        %v1061 = vsel %vm998, %v1045, 0.0
        %v1062 = vadd.f32 %v1060, %v1061
        %v1063 = vsel %vm998, %v1047, 0.0
        %v1064 = vadd.f32 %v1062, %v1063
        %v1065 = vsel %vm998, %v1049, 0.0
        %v1066 = vadd.f32 %v1064, %v1065
        %v1067 = vsel %vm998, %v1051, 0.0
        %v1068 = vadd.f32 %v1066, %v1067
        %v1069 = vsel %vm998, %v1053, 0.0
        %v1070 = vadd.f32 %v1068, %v1069
        %v1071 = vrot.slane %v1070, 4
        %v1072 = vadd.f32 %v1070, %v1071
        %v1073 = vrot.slane %v1072, 2
        %v1074 = vadd.f32 %v1072, %v1073
        %v1075 = vrot.slane %v1074, 1
        %v1076 = vadd.f32 %v1074, %v1075
        %v1077 = vadd.f32 %v1055, %v1076
        %vm1078 = vcmask 516096
        %1079 = vst.msk [vmem:[#allocation4] sm:$0x1] %vm1078, %v1077
        %v1080 = vld [vmem:[#allocation5] sm:$0xff]
        %v1081 = vld [vmem:[#allocation5 + $0x8] sm:$0xff]
        %v1083 = vlaneseq
        %v1084 = vshrl.u32 %v1083, 7
        %v1085 = vsub.s32 0, %v1084
        %v1086 = vrot.slane %v1023, %v1085
        %v1088 = vmul.f32 %v1086, %v1080
        %v1089 = vmul.f32 %v1086, %v1081
        %v1091 = vsel %vm998, %v828, 0
        %v1094 = vsel %vm998, %v829, 0
        %1096 = vmatprep.subr.mxu0 0.0
        %1097 = vmatpush1.msra.mxu0 %v1039
        %1098 = vmatprep.subr.mxu0 0.0
        %1099 = vmatpush1.msra.mxu0 %v1041
        %1100 = vmatprep.subr.mxu0 0.0
        %1101 = vmatpush1.msra.mxu0 %v1043
        %1102 = vmatprep.subr.mxu0 0.0
        %1103 = vmatpush1.msra.mxu0 %v1045
        %1104 = vmatprep.subr.mxu0 0.0
        %1105 = vmatpush1.msra.mxu0 %v1047
        %1106 = vmatprep.subr.mxu0 0.0
        %1107 = vmatpush1.msra.mxu0 %v1049
        %1108 = vmatprep.subr.mxu0 0.0
        %1109 = vmatpush1.msra.mxu0 %v1051
        %1110 = vmatprep.subr.mxu0 0.0
        %1111 = vmatpush1.msra.mxu0 %v1053
        %1112 = vmatprep.subr.mxu0 0.0
        %1113 = vmatpush1.msra.mxu0 0.0
        %1114 = vmatprep.subr.mxu0 0.0
        %1115 = vmatpush1.msra.mxu0 0.0
        %1116 = vmatprep.subr.mxu0 0.0
        %1117 = vmatpush1.msra.mxu0 0.0
        %1118 = vmatprep.subr.mxu0 0.0
        %1119 = vmatpush1.msra.mxu0 0.0
        %1120 = vmatprep.subr.mxu0 0.0
        %1121 = vmatpush1.msra.mxu0 0.0
        %1122 = vmatprep.subr.mxu0 0.0
        %1123 = vmatpush1.msra.mxu0 0.0
        %1124 = vmatprep.subr.mxu0 0.0
        %1125 = vmatpush1.msra.mxu0 0.0
        %1126 = vmatprep.subr.mxu0 0.0
        %1127 = vmatpush1.msra.mxu0 0.0
        %1128 = vmatprep.subr.mxu0 0.0
        %1129 = vmatpush1.msra.mxu0 0.0
        %1130 = vmatprep.subr.mxu0 0.0
        %1131 = vmatpush1.msra.mxu0 0.0
        %1132 = vmatprep.subr.mxu0 0.0
        %1133 = vmatpush1.msra.mxu0 0.0
        %1134 = vmatprep.subr.mxu0 0.0
        %1135 = vmatpush1.msra.mxu0 0.0
        %1136 = vmatprep.subr.mxu0 0.0
        %1137 = vmatpush1.msra.mxu0 0.0
        %1138 = vmatprep.subr.mxu0 0.0
        %1139 = vmatpush1.msra.mxu0 0.0
        %1140 = vmatprep.subr.mxu0 0.0
        %1141 = vmatpush1.msra.mxu0 0.0
        %1142 = vmatprep.subr.mxu0 0.0
        %1143 = vmatpush1.msra.mxu0 0.0
        %1144 = vmatprep.subr.mxu0 0.0
        %1145 = vmatpush1.msra.mxu0 0.0
        %1146 = vmatprep.subr.mxu0 0.0
        %1147 = vmatpush1.msra.mxu0 0.0
        %1148 = vmatprep.subr.mxu0 0.0
        %1149 = vmatpush1.msra.mxu0 0.0
        %1150 = vmatprep.subr.mxu0 0.0
        %1151 = vmatpush1.msra.mxu0 0.0
        %1152 = vmatprep.subr.mxu0 0.0
        %1153 = vmatpush1.msra.mxu0 0.0
        %1154 = vmatprep.subr.mxu0 0.0
        %1155 = vmatpush1.msra.mxu0 0.0
        %1156 = vmatprep.subr.mxu0 0.0
        %1157 = vmatpush1.msra.mxu0 0.0
        %1158 = vmatprep.subr.mxu0 0.0
        %1159 = vmatpush1.msra.mxu0 0.0
        %1160 = vmatprep.mubr.f32.mxu0 0.0
        %1161 = vmatmul.mubr.f32.gmra.mrb[0].mxu0 %v1091
        %v1162 = vpop.f32.mrb[0].mxu0
        %v1163 = vadd.f32 0.0, %v1162
        %v1164 = vpop.f32.mrb[0].mxu0
        %1165 = vmatprep.mubr.f32.mxu0 0.0
        %1166 = vmatmul.mubr.f32.gmra.mrb[0].mxu0 %v1094
        %v1167 = vpop.f32.mrb[0].mxu0
        %v1168 = vadd.f32 0.0, %v1167
        %v1169 = vpop.f32.mrb[0].mxu0
        %1170 = vdwg.mxu0
        %v1171 = vadd.f32 %v1088, %v1163
        %v1172 = vadd.f32 %v1089, %v1168
        %1173 = vst.msk [vmem:[#allocation5] sm:$0xff] %vm998, %v1171
        %1174 = vst.msk [vmem:[#allocation5 + $0x8] sm:$0xff] %vm998, %v1172
        %1175 = vst.msk [vmem:[#allocation3] sm:$0x1] %vm1078, %v1020
        // Predicated region
        $region77: #{tpu_custom_call.1} parent=59 // pred_check
          %p1176 = pneg %p522
        $region78: #{tpu_custom_call.1} parent=59 // pred_check_branch
          %1178 = sbr.rel (%p1176) target = $region80
        $region79: #{tpu_custom_call.1} parent=59 // pred_region
          %v1179 = vld [vmem:[#allocation4] sm:$0x1]
          %v1180 = vrcp.pop %v1179
          %v1181 = vmul.f32 %v1179, %v1180
          %v1182 = vsub.f32 2.0, %v1181
          %v1183 = vmul.f32 %v1180, %v1182
          %v1184 = vld [vmem:[#allocation5] sm:$0xff]
          %v1185 = vld [vmem:[#allocation5 + $0x8] sm:$0xff]
          %v1187 = vlaneseq
          %v1188 = vshrl.u32 %v1187, 7
          %v1189 = vsub.s32 0, %v1188
          %v1190 = vrot.slane %v1183, %v1189
          %v1192 = vmul.f32 %v1184, %v1190
          %v1193 = vmul.f32 %v1185, %v1190
          %v1194 = vld [vmem:[%s505] sm:$0xff]
          %v1195 = vld [vmem:[%s505 + $0x8] sm:$0xff]
          %v1196 = vadd.f32 %v1192, %v1194
          %v1197 = vadd.f32 %v1193, %v1195
          %v1198 = vld [vmem:[%s513] sm:$0xff]
          %v1199 = vld [vmem:[%s513 + $0x8] sm:$0xff]
          %v1200 = vadd.f32 %v1196, %v1198
          %v1201 = vadd.f32 %v1197, %v1199
          %1202 = vst.msk [vmem:[%s497] sm:$0xff] %vm998, %v1200
          %1203 = vst.msk [vmem:[%s497 + $0x8] sm:$0xff] %vm998, %v1201
        $region80: #{tpu_custom_call.1} parent=59 // pred_fallthru
          _
        %s1204 = sand.u32 %s295, 1
        %s1205 = scalar_lea.sflag [#allocation8], %s1204
        %s1206 = sand.u32 %s295, 1
        %s1207 = smul.addr %s1206, 16
        %s1208 = scalar_lea.vmem [#allocation12], %s1207
        // Predicated region
        $region81: #{tpu_custom_call.1} parent=59 // pred_check
          %p1209 = pneg %p305
        $region82: #{tpu_custom_call.1} parent=59 // pred_check_branch
          %1211 = sbr.rel (%p1209) target = $region84
        $region83: #{tpu_custom_call.1} parent=59 // pred_region
          %s1213 = ssub.s32 256, 256
          %1214 = vsyncadd %s1205, %s1213
          %s1215 = smul.addr %s33, 2
          %s1216 = sadd.s32 %s34, %s1215
          %s1217 = smul.addr %s1216, 128
          %s1218 = scalar_lea.hbm %s10, %s1217
          %s1219 = sshll.u32 %s1208, 4
          %s1220 = int_to_ptr.vmem [resolvable:$true] %s1219
          %1225 = dma.vmem_to_hbm [thread:$0]  %s1220, 256, %s1218, %s1205, 128, 128, 8
        $region84: #{tpu_custom_call.1} parent=59 // pred_fallthru
          _
      $region60: #{tpu_custom_call.1} parent=5 // pred_fallthru
        _
      %p1226 = scmp.le.s32.totalorder 2, %s23
      // Predicated region
      $region85: #{tpu_custom_call.1} parent=5 // pred_check
        %p1227 = pneg %p1226
      $region86: #{tpu_custom_call.1} parent=5 // pred_check_branch
        %1229 = sbr.rel (%p1227) target = $region88
      $region87: #{tpu_custom_call.1} parent=5 // pred_region
        %s1230 = ssub.s32 %s23, 2
        // Predicated region
        $region89: #{tpu_custom_call.1} parent=87 // pred_check
          %p1231 = pneg %p311
        $region90: #{tpu_custom_call.1} parent=87 // pred_check_branch
          %1233 = sbr.rel (%p1231) target = $region92
        $region91: #{tpu_custom_call.1} parent=87 // pred_region
          %s1234 = sand.u32 %s296, 1
          %s1235 = scalar_lea.sflag [#allocation8], %s1234
          %s1236 = sand.u32 %s296, 1
          %s1237 = smul.addr %s1236, 16
          %s1238 = scalar_lea.vmem [#allocation12], %s1237
          %1239 = dma.done %s1235, 256
        $region92: #{tpu_custom_call.1} parent=87 // pred_fallthru
          _
      $region88: #{tpu_custom_call.1} parent=5 // pred_fallthru
        _
    $region6: #{tpu_custom_call.1} parent=1 // loop_footer
      %s27 = sadd.s32 1, %s23
    $region7: #{tpu_custom_call.1} parent=1 // loop_footer_branch
      %22 = sbr.rel target = $region3
    $region8: #{tpu_custom_call.1} parent=1 // loop_exit
      _
    %1240 = vsyncpa [#allocation7], 1
    %s1241 = scalar_lea.sflag [#allocation7], 1
    %1242 = vsyncpa %s1241, 1
    %1243 = vsyncpa [#allocation10], 1
    %1244 = vsyncpa [#allocation8], 1
    %s1245 = scalar_lea.sflag [#allocation8], 1
    %1246 = vsyncpa %s1245, 1

</llo_original>
